<compile_context>
chip_gen: v5e
topology: v5e:2x2
jax: 0.10.0
libtpu: 0.0.40
codegen_flags: <defaults>
</compile_context>

<pallas_src>
import functools

import numpy as np
import jax
import jax.numpy as jnp
from jax.experimental import pallas as pl
from jax.experimental.pallas import tpu as pltpu


def _round_up(x, m):
    return ((x + m - 1) // m) * m


# ----------------------------- Pallas kernels ------------------------------

def make_encoder_kernel(n_layers, hid_dim):
    """Fused multi-layer LSTM encoder over the whole source sequence.

    Args layout: (zin_ref, w_hh_0, [w_ih_l, w_hh_l, b_l for l in 1..L-1], h_out, c_out)
      zin_ref : (1, B, 4H) precomputed layer-0 input projection (emb @ W_ih0^T + b0) at step t
      weights : pre-transposed, VMEM-resident (constant block index)
      h_out/c_out : (L, B, H) outputs used directly as the recurrent carry (constant block index).
    """
    H = hid_dim

    def kernel(zin_ref, *refs):
        w_hh0 = refs[0]
        layer_refs = refs[1:1 + 3 * (n_layers - 1)]
        h_ref = refs[1 + 3 * (n_layers - 1)]
        c_ref = refs[2 + 3 * (n_layers - 1)]

        t = pl.program_id(0)

        @pl.when(t == 0)
        def _init():
            h_ref[...] = jnp.zeros_like(h_ref)
            c_ref[...] = jnp.zeros_like(c_ref)

        def cell(z, c_prev):
            i = jax.nn.sigmoid(z[:, 0:H])
            f = jax.nn.sigmoid(z[:, H:2 * H])
            g = jnp.tanh(z[:, 2 * H:3 * H])
            o = jax.nn.sigmoid(z[:, 3 * H:4 * H])
            c_new = f * c_prev + i * g
            h_new = o * jnp.tanh(c_new)
            return h_new, c_new

        # Layer 0: input projection (incl. bias) was hoisted out of the recurrence.
        z0 = zin_ref[0] + jnp.dot(h_ref[0], w_hh0[...],
                                  preferred_element_type=jnp.float32)
        h_new, c_new = cell(z0, c_ref[0])
        h_ref[0] = h_new
        c_ref[0] = c_new
        x = h_new

        # Layers 1..L-1
        for l in range(1, n_layers):
            w_ih, w_hh, b = layer_refs[3 * (l - 1):3 * (l - 1) + 3]
            z = (jnp.dot(x, w_ih[...], preferred_element_type=jnp.float32)
                 + jnp.dot(h_ref[l], w_hh[...], preferred_element_type=jnp.float32)
                 + b[...])
            h_new, c_new = cell(z, c_ref[l])
            h_ref[l] = h_new
            c_ref[l] = c_new
            x = h_new

    return kernel


def make_decoder_kernel(n_layers, hid_dim):
    """Fused decode loop: embedding gather (one-hot matmul), L LSTM layers, vocab head,
    argmax and teacher-forcing select — all inside one gridded kernel.

    Args layout:
      scalar prefetch: use_teacher (T-1,) int32  (SMEM)
      inputs : teacher_oh (1,B,Vp) per-step, emb (Vp,E), [w_ih,w_hh,b]*L, fc_w (H,Vp),
               fc_b (1,Vp), h_init (L,B,H), c_init (L,B,H)
      outputs: logits (1,B,Vp) per-step
      scratch: h_s (L,B,H), c_s (L,B,H), oh_s (B,Vp)  -- carried across grid steps.
    """
    H = hid_dim

    def kernel(use_teacher_ref, teacher_oh_ref, emb_ref, *refs):
        lstm_refs = refs[:3 * n_layers]
        fc_w_ref = refs[3 * n_layers + 0]
        fc_b_ref = refs[3 * n_layers + 1]
        h_init_ref = refs[3 * n_layers + 2]
        c_init_ref = refs[3 * n_layers + 3]
        out_ref = refs[3 * n_layers + 4]
        h_s = refs[3 * n_layers + 5]
        c_s = refs[3 * n_layers + 6]
        oh_s = refs[3 * n_layers + 7]

        p = pl.program_id(0)

        @pl.when(p == 0)
        def _init():
            h_s[...] = h_init_ref[...]
            c_s[...] = c_init_ref[...]
            oh_s[...] = jnp.zeros_like(oh_s)

        # Input token selection: teacher token one-hot vs previous-step argmax one-hot.
        w = (use_teacher_ref[p] != 0).astype(jnp.float32)      # scalar blend weight
        onehot = w * teacher_oh_ref[0] + (1.0 - w) * oh_s[...]  # (B, Vp)
        # Embedding gather as a one-hot matmul (MXU-friendly, no scalar round-trips).
        x = jnp.dot(onehot, emb_ref[...], preferred_element_type=jnp.float32)  # (B, E)

        def cell(z, c_prev):
            i = jax.nn.sigmoid(z[:, 0:H])
            f = jax.nn.sigmoid(z[:, H:2 * H])
            g = jnp.tanh(z[:, 2 * H:3 * H])
            o = jax.nn.sigmoid(z[:, 3 * H:4 * H])
            c_new = f * c_prev + i * g
            return o * jnp.tanh(c_new), c_new

        for l in range(n_layers):
            w_ih, w_hh, b = lstm_refs[3 * l:3 * l + 3]
            z = (jnp.dot(x, w_ih[...], preferred_element_type=jnp.float32)
                 + jnp.dot(h_s[l], w_hh[...], preferred_element_type=jnp.float32)
                 + b[...])
            h_new, c_new = cell(z, c_s[l])
            h_s[l] = h_new
            c_s[l] = c_new
            x = h_new

        # Vocab head (padded columns carry a -1e30 bias so argmax never picks them).
        logits = (jnp.dot(x, fc_w_ref[...], preferred_element_type=jnp.float32)
                  + fc_b_ref[...])                              # (B, Vp)
        out_ref[0] = logits

        # one-hot(argmax(logits)) for the next step's model-fed path (first-max tie-break).
        col = jax.lax.broadcasted_iota(jnp.int32, logits.shape, 1)
        mx = jnp.max(logits, axis=1, keepdims=True)
        top1 = jnp.min(jnp.where(logits == mx, col, logits.shape[1]),
                       axis=1, keepdims=True)                   # (B, 1) int32
        oh_s[...] = (col == top1).astype(jnp.float32)

    return kernel


# ------------------------------ model pieces -------------------------------

def init_lstm_params(key, in_dim, hid_dim, n_layers):
    """torch.nn.LSTM-style init; weights pre-transposed to (in, 4H)/(H, 4H) for the kernels."""
    params = []
    k = 1.0 / np.sqrt(hid_dim)
    for layer in range(n_layers):
        key, k1, k2, k3, k4 = jax.random.split(key, 5)
        d_in = in_dim if layer == 0 else hid_dim
        wih = jax.random.uniform(k1, (4 * hid_dim, d_in), jnp.float32, -k, k)
        whh = jax.random.uniform(k2, (4 * hid_dim, hid_dim), jnp.float32, -k, k)
        bih = jax.random.uniform(k3, (4 * hid_dim,), jnp.float32, -k, k)
        bhh = jax.random.uniform(k4, (4 * hid_dim,), jnp.float32, -k, k)
        params.append((wih.T, whh.T, (bih + bhh).reshape(1, -1)))
    return params


def encoder_forward(params, src_p):
    # src_p: (src_len, B_pad) int32
    src_len, B_pad = src_p.shape
    H, L = params["hid_dim"], params["n_layers"]
    emb = params["embedding"][src_p]                       # (src_len, B_pad, E) -- XLA gather (glue)
    # TODO(synk): nn.LSTM inter-layer dropout not applied (inference semantics).

    w_ih0, w_hh0, b0 = params["lstm"][0]
    # Hoist the time-parallel layer-0 input projection out of the sequential recurrence.
    zin = jnp.einsum("tbe,eg->tbg", emb, w_ih0) + b0       # (src_len, B_pad, 4H)

    args = [zin, w_hh0]
    in_specs = [pl.BlockSpec((1, B_pad, 4 * H), lambda t: (t, 0, 0)),
                pl.BlockSpec(w_hh0.shape, lambda t: (0, 0))]        # VMEM-resident weight
    for l in range(1, L):
        w_ih, w_hh, b = params["lstm"][l]
        args += [w_ih, w_hh, b]
        in_specs += [pl.BlockSpec(w_ih.shape, lambda t: (0, 0)),
                     pl.BlockSpec(w_hh.shape, lambda t: (0, 0)),
                     pl.BlockSpec(b.shape, lambda t: (0, 0))]

    flops = src_len * 2 * B_pad * 4 * H * (H + (L - 1) * 2 * H)
    trans = src_len * L * B_pad * 5 * H
    nbytes = sum(int(np.prod(a.shape)) * 4 for a in args) + 2 * L * B_pad * H * 4

    h, c = pl.pallas_call(
        make_encoder_kernel(L, H),
        grid_spec=pltpu.PrefetchScalarGridSpec(
            num_scalar_prefetch=0,
            grid=(src_len,),
            in_specs=in_specs,
            out_specs=(pl.BlockSpec((L, B_pad, H), lambda t: (0, 0, 0)),
                       pl.BlockSpec((L, B_pad, H), lambda t: (0, 0, 0))),
        ),
        out_shape=(jax.ShapeDtypeStruct((L, B_pad, H), jnp.float32),
                   jax.ShapeDtypeStruct((L, B_pad, H), jnp.float32)),
        compiler_params=pltpu.CompilerParams(dimension_semantics=("arbitrary",)),
        cost_estimate=pl.CostEstimate(flops=flops, transcendentals=trans,
                                      bytes_accessed=nbytes),
    )(*args)
    return h, c


def decoder_forward(params, use_teacher, teacher_oh, h0, c0):
    # teacher_oh: (T-1, B_pad, V_pad) f32 one-hot teacher tokens; h0/c0: (L, B_pad, H)
    T1, B_pad, V_pad = teacher_oh.shape
    H, L = params["hid_dim"], params["n_layers"]
    emb = params["embedding_pad"]     # (V_pad, E)
    fc_w = params["fc_w_t"]           # (H, V_pad)
    fc_b = params["fc_b_pad"]         # (1, V_pad), padded lanes = -1e30

    args = [teacher_oh, emb]
    in_specs = [pl.BlockSpec((1, B_pad, V_pad), lambda p, ut: (p, 0, 0)),
                pl.BlockSpec(emb.shape, lambda p, ut: (0, 0))]
    for l in range(L):
        w_ih, w_hh, b = params["lstm"][l]
        args += [w_ih, w_hh, b]
        in_specs += [pl.BlockSpec(w_ih.shape, lambda p, ut: (0, 0)),
                     pl.BlockSpec(w_hh.shape, lambda p, ut: (0, 0)),
                     pl.BlockSpec(b.shape, lambda p, ut: (0, 0))]
    args += [fc_w, fc_b, h0, c0]
    in_specs += [pl.BlockSpec(fc_w.shape, lambda p, ut: (0, 0)),
                 pl.BlockSpec(fc_b.shape, lambda p, ut: (0, 0)),
                 pl.BlockSpec(h0.shape, lambda p, ut: (0, 0, 0)),
                 pl.BlockSpec(c0.shape, lambda p, ut: (0, 0, 0))]

    E = emb.shape[1]
    flops = T1 * 2 * B_pad * (V_pad * E + 4 * H * (E + H)
                              + (L - 1) * 4 * H * 2 * H + H * V_pad)
    trans = T1 * L * B_pad * 5 * H
    nbytes = sum(int(np.prod(a.shape)) * 4 for a in args) + T1 * B_pad * V_pad * 4

    logits = pl.pallas_call(
        make_decoder_kernel(L, H),
        grid_spec=pltpu.PrefetchScalarGridSpec(
            num_scalar_prefetch=1,          # use_teacher mask in SMEM
            grid=(T1,),
            in_specs=in_specs,
            out_specs=pl.BlockSpec((1, B_pad, V_pad), lambda p, ut: (p, 0, 0)),
            scratch_shapes=[pltpu.VMEM((L, B_pad, H), jnp.float32),
                            pltpu.VMEM((L, B_pad, H), jnp.float32),
                            pltpu.VMEM((B_pad, V_pad), jnp.float32)],
        ),
        out_shape=jax.ShapeDtypeStruct((T1, B_pad, V_pad), jnp.float32),
        compiler_params=pltpu.CompilerParams(dimension_semantics=("arbitrary",)),
        cost_estimate=pl.CostEstimate(flops=flops, transcendentals=trans,
                                      bytes_accessed=nbytes),
    )(use_teacher, *args)
    return logits


def seq2seq_forward(enc_params, dec_params, src, trg, use_teacher):
    # src/trg: (len, B) int32; use_teacher: (trg_len-1,) int32 (1 => feed ground-truth token)
    src_len, B = src.shape
    T = trg.shape[0]
    V = dec_params["output_dim"]
    V_pad = dec_params["vocab_pad"]
    B_pad = _round_up(max(B, 8), 8)            # sublane-aligned batch

    src_p = jnp.pad(src, ((0, 0), (0, B_pad - B)))
    trg_p = jnp.pad(trg, ((0, 0), (0, B_pad - B)))

    h, c = encoder_forward(enc_params, src_p)

    teacher_oh = jax.nn.one_hot(trg_p[:T - 1], V_pad, dtype=jnp.float32)  # (T-1, B_pad, V_pad)
    logits = decoder_forward(dec_params, use_teacher, teacher_oh, h, c)   # (T-1, B_pad, V_pad)

    # outputs[0] stays zero (reference semantics); strip batch/vocab padding.
    out = jnp.concatenate(
        [jnp.zeros((1, B, V), jnp.float32), logits[:, :B, :V]], axis=0)
    return out


# ---------------------------------- main -----------------------------------

if __name__ == "__main__":
    SRC_VOCAB, TRG_VOCAB = 16, 16
    EMB, HID, LAYERS = 32, 32, 2
    SRC_LEN, TRG_LEN, BATCH = 8, 8, 2
    V_PAD = _round_up(TRG_VOCAB, 128)          # lane-dense vocab head

    key = jax.random.PRNGKey(0)
    (key, ksrc, ktrg, kenc_emb, kdec_emb,
     kenc_lstm, kdec_lstm, kfc_w, kfc_b, ktf) = jax.random.split(key, 10)

    src = jax.random.randint(ksrc, (SRC_LEN, BATCH), 0, SRC_VOCAB, dtype=jnp.int32)
    trg = jax.random.randint(ktrg, (TRG_LEN, BATCH), 0, TRG_VOCAB, dtype=jnp.int32)

    enc_params = {
        "embedding": jax.random.normal(kenc_emb, (SRC_VOCAB, EMB), jnp.float32),
        "lstm": init_lstm_params(kenc_lstm, EMB, HID, LAYERS),
        "hid_dim": HID, "n_layers": LAYERS,
    }

    kfc = 1.0 / np.sqrt(HID)
    fc_w = jax.random.uniform(kfc_w, (TRG_VOCAB, HID), jnp.float32, -kfc, kfc)
    fc_b = jax.random.uniform(kfc_b, (TRG_VOCAB,), jnp.float32, -kfc, kfc)
    dec_emb = jax.random.normal(kdec_emb, (TRG_VOCAB, EMB), jnp.float32)

    dec_params = {
        "embedding_pad": jnp.zeros((V_PAD, EMB), jnp.float32).at[:TRG_VOCAB].set(dec_emb),
        "lstm": init_lstm_params(kdec_lstm, EMB, HID, LAYERS),
        "fc_w_t": jnp.zeros((HID, V_PAD), jnp.float32).at[:, :TRG_VOCAB].set(fc_w.T),
        "fc_b_pad": jnp.full((1, V_PAD), -1e30, jnp.float32).at[0, :TRG_VOCAB].set(fc_b),
        "hid_dim": HID, "n_layers": LAYERS,
        "output_dim": TRG_VOCAB, "vocab_pad": V_PAD,
    }

    # Deterministic stand-in for the per-step `random.random() < 0.5` draws.
    # use_teacher[p] decides the input fed at decode step p (+forced teacher at p==0).
    tf_draw = jax.random.uniform(ktf, (TRG_LEN,)) < 0.5
    use_teacher = jnp.concatenate(
        [jnp.ones((1,), jnp.int32), tf_draw[1:TRG_LEN - 1].astype(jnp.int32)])

    fwd = jax.jit(functools.partial(seq2seq_forward, enc_params, dec_params))
    out = fwd(src, trg, use_teacher)
    jax.block_until_ready(out)

    assert out.shape == (TRG_LEN, BATCH, TRG_VOCAB)
    assert out.dtype == jnp.float32
    assert bool(jnp.all(jnp.isfinite(out)))
    print("KERNEL_OK")
</pallas_src>

<mosaic_0001>
module attributes {stable_mosaic.version = 11 : i64} {
  func.func @kernel(%arg0: i32, %arg1: memref<1x8x128xf32, #tpu.memory_space<vmem>>, %arg2: memref<32x128xf32, #tpu.memory_space<vmem>>, %arg3: memref<32x128xf32, #tpu.memory_space<vmem>>, %arg4: memref<32x128xf32, #tpu.memory_space<vmem>>, %arg5: memref<1x128xf32, #tpu.memory_space<vmem>>, %arg6: memref<2x8x32xf32, #tpu.memory_space<vmem>>, %arg7: memref<2x8x32xf32, #tpu.memory_space<vmem>>) attributes {dimension_semantics = [#tpu.dimension_semantics<arbitrary>], iteration_bounds = array<i64: 8>, scalar_prefetch = 0 : i64, scratch_operands = 0 : i64, tpu.core_type = #tpu.core_type<tc>, window_params = [{transform_indices = @transform_0, window_bounds = array<i64: 1, 8, 128>}, {pipeline_mode = #tpu.pipeline_mode<synchronous>, transform_indices = @transform_1, window_bounds = array<i64: 32, 128>}, {pipeline_mode = #tpu.pipeline_mode<synchronous>, transform_indices = @transform_2, window_bounds = array<i64: 32, 128>}, {pipeline_mode = #tpu.pipeline_mode<synchronous>, transform_indices = @transform_3, window_bounds = array<i64: 32, 128>}, {pipeline_mode = #tpu.pipeline_mode<synchronous>, transform_indices = @transform_4, window_bounds = array<i64: 1, 128>}, {pipeline_mode = #tpu.pipeline_mode<synchronous>, transform_indices = @transform_5, window_bounds = array<i64: 2, 8, 32>}, {pipeline_mode = #tpu.pipeline_mode<synchronous>, transform_indices = @transform_6, window_bounds = array<i64: 2, 8, 32>}]} {
    %c0_i32 = arith.constant 0 : i32
    %0 = arith.cmpi eq, %arg0, %c0_i32 : i32
    %1 = arith.extui %0 : i1 to i32
    %c0_i32_0 = arith.constant 0 : i32
    %2 = arith.cmpi ne, %1, %c0_i32_0 : i32
    scf.if %2 {
      %cst_42 = arith.constant 0.000000e+00 : f32
      %86 = vector.broadcast %cst_42 : f32 to vector<2x8x32xf32>
      %c0_43 = arith.constant 0 : index
      %c0_44 = arith.constant 0 : index
      %c0_45 = arith.constant 0 : index
      %87 = vector.load %arg6[%c0_43, %c0_44, %c0_45] : memref<2x8x32xf32, #tpu.memory_space<vmem>>, vector<2x8x32xf32>
      tpu.vector_store %arg6[%c0_43, %c0_44, %c0_45], %86 {strides = array<i32>} : memref<2x8x32xf32, #tpu.memory_space<vmem>>, vector<2x8x32xf32>,
      %cst_46 = arith.constant 0.000000e+00 : f32
      %88 = vector.broadcast %cst_46 : f32 to vector<2x8x32xf32>
      %c0_47 = arith.constant 0 : index
      %c0_48 = arith.constant 0 : index
      %c0_49 = arith.constant 0 : index
      %89 = vector.load %arg7[%c0_47, %c0_48, %c0_49] : memref<2x8x32xf32, #tpu.memory_space<vmem>>, vector<2x8x32xf32>
      tpu.vector_store %arg7[%c0_47, %c0_48, %c0_49], %88 {strides = array<i32>} : memref<2x8x32xf32, #tpu.memory_space<vmem>>, vector<2x8x32xf32>,
    } else {
    }
    %c0 = arith.constant 0 : index
    %c0_1 = arith.constant 0 : index
    %c0_2 = arith.constant 0 : index
    %3 = vector.load %arg1[%c0, %c0_1, %c0_2] : memref<1x8x128xf32, #tpu.memory_space<vmem>>, vector<1x8x128xf32>
    %4 = vector.shape_cast %3 : vector<1x8x128xf32> to vector<8x128xf32>
    %c0_3 = arith.constant 0 : index
    %c0_4 = arith.constant 0 : index
    %c0_5 = arith.constant 0 : index
    %5 = vector.load %arg6[%c0_3, %c0_4, %c0_5] : memref<2x8x32xf32, #tpu.memory_space<vmem>>, vector<1x8x32xf32>
    %6 = vector.shape_cast %5 : vector<1x8x32xf32> to vector<8x32xf32>
    %c0_6 = arith.constant 0 : index
    %c0_7 = arith.constant 0 : index
    %7 = vector.load %arg2[%c0_6, %c0_7] : memref<32x128xf32, #tpu.memory_space<vmem>>, vector<32x128xf32>
    %cst = arith.constant dense<0.000000e+00> : vector<8x128xf32>
    %8 = tpu.matmul %6, %7, %cst {dimension_numbers = #tpu.dot_dimension_numbers<[1], [0], [0], [1], [0, 0, 1, 1], [], []>} : vector<8x32xf32>, vector<32x128xf32>, vector<8x128xf32> -> vector<8x128xf32>
    %9 = arith.addf %4, %8 : vector<8x128xf32>
    %c0_8 = arith.constant 0 : index
    %c0_9 = arith.constant 0 : index
    %c0_10 = arith.constant 0 : index
    %10 = vector.load %arg7[%c0_8, %c0_9, %c0_10] : memref<2x8x32xf32, #tpu.memory_space<vmem>>, vector<1x8x32xf32>
    %11 = vector.shape_cast %10 : vector<1x8x32xf32> to vector<8x32xf32>
    %12 = vector.extract_strided_slice %9 {offsets = [0, 0], sizes = [8, 32], strides = [1, 1]} : vector<8x128xf32> to vector<8x32xf32>
    %13 = arith.negf %12 : vector<8x32xf32>
    %14 = math.exp %13 : vector<8x32xf32>
    %cst_11 = arith.constant 1.000000e+00 : f32
    %15 = vector.broadcast %cst_11 : f32 to vector<8x32xf32>
    %16 = arith.addf %15, %14 : vector<8x32xf32>
    %17 = arith.divf %15, %16 : vector<8x32xf32>
    %18 = vector.extract_strided_slice %9 {offsets = [0, 32], sizes = [8, 32], strides = [1, 1]} : vector<8x128xf32> to vector<8x32xf32>
    %19 = arith.negf %18 : vector<8x32xf32>
    %20 = math.exp %19 : vector<8x32xf32>
    %cst_12 = arith.constant 1.000000e+00 : f32
    %21 = vector.broadcast %cst_12 : f32 to vector<8x32xf32>
    %22 = arith.addf %21, %20 : vector<8x32xf32>
    %23 = arith.divf %21, %22 : vector<8x32xf32>
    %24 = vector.extract_strided_slice %9 {offsets = [0, 64], sizes = [8, 32], strides = [1, 1]} : vector<8x128xf32> to vector<8x32xf32>
    %25 = math.tanh %24 : vector<8x32xf32>
    %26 = vector.extract_strided_slice %9 {offsets = [0, 96], sizes = [8, 32], strides = [1, 1]} : vector<8x128xf32> to vector<8x32xf32>
    %27 = arith.negf %26 : vector<8x32xf32>
    %28 = math.exp %27 : vector<8x32xf32>
    %cst_13 = arith.constant 1.000000e+00 : f32
    %29 = vector.broadcast %cst_13 : f32 to vector<8x32xf32>
    %30 = arith.addf %29, %28 : vector<8x32xf32>
    %31 = arith.divf %29, %30 : vector<8x32xf32>
    %32 = arith.mulf %23, %11 : vector<8x32xf32>
    %33 = arith.mulf %17, %25 : vector<8x32xf32>
    %34 = arith.addf %32, %33 : vector<8x32xf32>
    %35 = math.tanh %34 : vector<8x32xf32>
    %36 = arith.mulf %31, %35 : vector<8x32xf32>
    %c0_14 = arith.constant 0 : index
    %c0_15 = arith.constant 0 : index
    %c0_16 = arith.constant 0 : index
    %37 = vector.load %arg6[%c0_14, %c0_15, %c0_16] : memref<2x8x32xf32, #tpu.memory_space<vmem>>, vector<1x8x32xf32>
    %38 = vector.shape_cast %37 : vector<1x8x32xf32> to vector<8x32xf32>
    %39 = vector.shape_cast %36 : vector<8x32xf32> to vector<1x8x32xf32>
    tpu.vector_store %arg6[%c0_14, %c0_15, %c0_16], %39 {strides = array<i32>} : memref<2x8x32xf32, #tpu.memory_space<vmem>>, vector<1x8x32xf32>,
    %c0_17 = arith.constant 0 : index
    %c0_18 = arith.constant 0 : index
    %c0_19 = arith.constant 0 : index
    %40 = vector.load %arg7[%c0_17, %c0_18, %c0_19] : memref<2x8x32xf32, #tpu.memory_space<vmem>>, vector<1x8x32xf32>
    %41 = vector.shape_cast %40 : vector<1x8x32xf32> to vector<8x32xf32>
    %42 = vector.shape_cast %34 : vector<8x32xf32> to vector<1x8x32xf32>
    tpu.vector_store %arg7[%c0_17, %c0_18, %c0_19], %42 {strides = array<i32>} : memref<2x8x32xf32, #tpu.memory_space<vmem>>, vector<1x8x32xf32>,
    %c0_20 = arith.constant 0 : index
    %c0_21 = arith.constant 0 : index
    %43 = vector.load %arg3[%c0_20, %c0_21] : memref<32x128xf32, #tpu.memory_space<vmem>>, vector<32x128xf32>
    %cst_22 = arith.constant dense<0.000000e+00> : vector<8x128xf32>
    %44 = tpu.matmul %36, %43, %cst_22 {dimension_numbers = #tpu.dot_dimension_numbers<[1], [0], [0], [1], [0, 0, 1, 1], [], []>} : vector<8x32xf32>, vector<32x128xf32>, vector<8x128xf32> -> vector<8x128xf32>
    %c1 = arith.constant 1 : index
    %c0_23 = arith.constant 0 : index
    %c0_24 = arith.constant 0 : index
    %45 = vector.load %arg6[%c1, %c0_23, %c0_24] : memref<2x8x32xf32, #tpu.memory_space<vmem>>, vector<1x8x32xf32>
    %46 = vector.shape_cast %45 : vector<1x8x32xf32> to vector<8x32xf32>
    %c0_25 = arith.constant 0 : index
    %c0_26 = arith.constant 0 : index
    %47 = vector.load %arg4[%c0_25, %c0_26] : memref<32x128xf32, #tpu.memory_space<vmem>>, vector<32x128xf32>
    %cst_27 = arith.constant dense<0.000000e+00> : vector<8x128xf32>
    %48 = tpu.matmul %46, %47, %cst_27 {dimension_numbers = #tpu.dot_dimension_numbers<[1], [0], [0], [1], [0, 0, 1, 1], [], []>} : vector<8x32xf32>, vector<32x128xf32>, vector<8x128xf32> -> vector<8x128xf32>
    %49 = arith.addf %44, %48 : vector<8x128xf32>
    %c0_28 = arith.constant 0 : index
    %c0_29 = arith.constant 0 : index
    %50 = vector.load %arg5[%c0_28, %c0_29] : memref<1x128xf32, #tpu.memory_space<vmem>>, vector<1x128xf32>
    %51 = vector.broadcast %50 : vector<1x128xf32> to vector<8x128xf32>
    %52 = arith.addf %49, %51 : vector<8x128xf32>
    %c1_30 = arith.constant 1 : index
    %c0_31 = arith.constant 0 : index
    %c0_32 = arith.constant 0 : index
    %53 = vector.load %arg7[%c1_30, %c0_31, %c0_32] : memref<2x8x32xf32, #tpu.memory_space<vmem>>, vector<1x8x32xf32>
    %54 = vector.shape_cast %53 : vector<1x8x32xf32> to vector<8x32xf32>
    %55 = vector.extract_strided_slice %52 {offsets = [0, 0], sizes = [8, 32], strides = [1, 1]} : vector<8x128xf32> to vector<8x32xf32>
    %56 = arith.negf %55 : vector<8x32xf32>
    %57 = math.exp %56 : vector<8x32xf32>
    %cst_33 = arith.constant 1.000000e+00 : f32
    %58 = vector.broadcast %cst_33 : f32 to vector<8x32xf32>
    %59 = arith.addf %58, %57 : vector<8x32xf32>
    %60 = arith.divf %58, %59 : vector<8x32xf32>
    %61 = vector.extract_strided_slice %52 {offsets = [0, 32], sizes = [8, 32], strides = [1, 1]} : vector<8x128xf32> to vector<8x32xf32>
    %62 = arith.negf %61 : vector<8x32xf32>
    %63 = math.exp %62 : vector<8x32xf32>
    %cst_34 = arith.constant 1.000000e+00 : f32
    %64 = vector.broadcast %cst_34 : f32 to vector<8x32xf32>
    %65 = arith.addf %64, %63 : vector<8x32xf32>
    %66 = arith.divf %64, %65 : vector<8x32xf32>
    %67 = vector.extract_strided_slice %52 {offsets = [0, 64], sizes = [8, 32], strides = [1, 1]} : vector<8x128xf32> to vector<8x32xf32>
    %68 = math.tanh %67 : vector<8x32xf32>
    %69 = vector.extract_strided_slice %52 {offsets = [0, 96], sizes = [8, 32], strides = [1, 1]} : vector<8x128xf32> to vector<8x32xf32>
    %70 = arith.negf %69 : vector<8x32xf32>
    %71 = math.exp %70 : vector<8x32xf32>
    %cst_35 = arith.constant 1.000000e+00 : f32
    %72 = vector.broadcast %cst_35 : f32 to vector<8x32xf32>
    %73 = arith.addf %72, %71 : vector<8x32xf32>
    %74 = arith.divf %72, %73 : vector<8x32xf32>
    %75 = arith.mulf %66, %54 : vector<8x32xf32>
    %76 = arith.mulf %60, %68 : vector<8x32xf32>
    %77 = arith.addf %75, %76 : vector<8x32xf32>
    %78 = math.tanh %77 : vector<8x32xf32>
    %79 = arith.mulf %74, %78 : vector<8x32xf32>
    %c1_36 = arith.constant 1 : index
    %c0_37 = arith.constant 0 : index
    %c0_38 = arith.constant 0 : index
    %80 = vector.load %arg6[%c1_36, %c0_37, %c0_38] : memref<2x8x32xf32, #tpu.memory_space<vmem>>, vector<1x8x32xf32>
    %81 = vector.shape_cast %80 : vector<1x8x32xf32> to vector<8x32xf32>
    %82 = vector.shape_cast %79 : vector<8x32xf32> to vector<1x8x32xf32>
    tpu.vector_store %arg6[%c1_36, %c0_37, %c0_38], %82 {strides = array<i32>} : memref<2x8x32xf32, #tpu.memory_space<vmem>>, vector<1x8x32xf32>,
    %c1_39 = arith.constant 1 : index
    %c0_40 = arith.constant 0 : index
    %c0_41 = arith.constant 0 : index
    %83 = vector.load %arg7[%c1_39, %c0_40, %c0_41] : memref<2x8x32xf32, #tpu.memory_space<vmem>>, vector<1x8x32xf32>
    %84 = vector.shape_cast %83 : vector<1x8x32xf32> to vector<8x32xf32>
    %85 = vector.shape_cast %77 : vector<8x32xf32> to vector<1x8x32xf32>
    tpu.vector_store %arg7[%c1_39, %c0_40, %c0_41], %85 {strides = array<i32>} : memref<2x8x32xf32, #tpu.memory_space<vmem>>, vector<1x8x32xf32>,
    return
  }
  func.func @transform_0(%arg0: i32) -> (i32, i32, i32) {
    %c0_i32 = arith.constant 0 : i32
    %c0_i32_0 = arith.constant 0 : i32
    %c0_i32_1 = arith.constant 0 : i32
    return %arg0, %c0_i32, %c0_i32_0 : i32, i32, i32
  }
  func.func @transform_1(%arg0: i32) -> (i32, i32) {
    %c0_i32 = arith.constant 0 : i32
    %c0_i32_0 = arith.constant 0 : i32
    %c0_i32_1 = arith.constant 0 : i32
    return %c0_i32, %c0_i32_0 : i32, i32
  }
  func.func @transform_2(%arg0: i32) -> (i32, i32) {
    %c0_i32 = arith.constant 0 : i32
    %c0_i32_0 = arith.constant 0 : i32
    %c0_i32_1 = arith.constant 0 : i32
    return %c0_i32, %c0_i32_0 : i32, i32
  }
  func.func @transform_3(%arg0: i32) -> (i32, i32) {
    %c0_i32 = arith.constant 0 : i32
    %c0_i32_0 = arith.constant 0 : i32
    %c0_i32_1 = arith.constant 0 : i32
    return %c0_i32, %c0_i32_0 : i32, i32
  }
  func.func @transform_4(%arg0: i32) -> (i32, i32) {
    %c0_i32 = arith.constant 0 : i32
    %c0_i32_0 = arith.constant 0 : i32
    %c0_i32_1 = arith.constant 0 : i32
    return %c0_i32, %c0_i32_0 : i32, i32
  }
  func.func @transform_5(%arg0: i32) -> (i32, i32, i32) {
    %c0_i32 = arith.constant 0 : i32
    %c0_i32_0 = arith.constant 0 : i32
    %c0_i32_1 = arith.constant 0 : i32
    %c0_i32_2 = arith.constant 0 : i32
    return %c0_i32, %c0_i32_0, %c0_i32_1 : i32, i32, i32
  }
  func.func @transform_6(%arg0: i32) -> (i32, i32, i32) {
    %c0_i32 = arith.constant 0 : i32
    %c0_i32_0 = arith.constant 0 : i32
    %c0_i32_1 = arith.constant 0 : i32
    %c0_i32_2 = arith.constant 0 : i32
    return %c0_i32, %c0_i32_0, %c0_i32_1 : i32, i32, i32
  }
}

module attributes {stable_mosaic.version = 11 : i64} {
  func.func @kernel(%arg0: i32, %arg1: memref<7xi32, #tpu.memory_space<smem>>, %arg2: memref<1x8x128xf32, #tpu.memory_space<vmem>>, %arg3: memref<128x32xf32, #tpu.memory_space<vmem>>, %arg4: memref<32x128xf32, #tpu.memory_space<vmem>>, %arg5: memref<32x128xf32, #tpu.memory_space<vmem>>, %arg6: memref<1x128xf32, #tpu.memory_space<vmem>>, %arg7: memref<32x128xf32, #tpu.memory_space<vmem>>, %arg8: memref<32x128xf32, #tpu.memory_space<vmem>>, %arg9: memref<1x128xf32, #tpu.memory_space<vmem>>, %arg10: memref<32x128xf32, #tpu.memory_space<vmem>>, %arg11: memref<1x128xf32, #tpu.memory_space<vmem>>, %arg12: memref<2x8x32xf32, #tpu.memory_space<vmem>>, %arg13: memref<2x8x32xf32, #tpu.memory_space<vmem>>, %arg14: memref<1x8x128xf32, #tpu.memory_space<vmem>>, %arg15: memref<2x8x32xf32, #tpu.memory_space<vmem>>, %arg16: memref<2x8x32xf32, #tpu.memory_space<vmem>>, %arg17: memref<8x128xf32, #tpu.memory_space<vmem>>) attributes {dimension_semantics = [#tpu.dimension_semantics<arbitrary>], iteration_bounds = array<i64: 7>, scalar_prefetch = 1 : i64, scratch_operands = 3 : i64, tpu.core_type = #tpu.core_type<tc>, window_params = [{transform_indices = @transform_0, window_bounds = array<i64: 1, 8, 128>}, {pipeline_mode = #tpu.pipeline_mode<synchronous>, transform_indices = @transform_1, window_bounds = array<i64: 128, 32>}, {pipeline_mode = #tpu.pipeline_mode<synchronous>, transform_indices = @transform_2, window_bounds = array<i64: 32, 128>}, {pipeline_mode = #tpu.pipeline_mode<synchronous>, transform_indices = @transform_3, window_bounds = array<i64: 32, 128>}, {pipeline_mode = #tpu.pipeline_mode<synchronous>, transform_indices = @transform_4, window_bounds = array<i64: 1, 128>}, {pipeline_mode = #tpu.pipeline_mode<synchronous>, transform_indices = @transform_5, window_bounds = array<i64: 32, 128>}, {pipeline_mode = #tpu.pipeline_mode<synchronous>, transform_indices = @transform_6, window_bounds = array<i64: 32, 128>}, {pipeline_mode = #tpu.pipeline_mode<synchronous>, transform_indices = @transform_7, window_bounds = array<i64: 1, 128>}, {pipeline_mode = #tpu.pipeline_mode<synchronous>, transform_indices = @transform_8, window_bounds = array<i64: 32, 128>}, {pipeline_mode = #tpu.pipeline_mode<synchronous>, transform_indices = @transform_9, window_bounds = array<i64: 1, 128>}, {pipeline_mode = #tpu.pipeline_mode<synchronous>, transform_indices = @transform_10, window_bounds = array<i64: 2, 8, 32>}, {pipeline_mode = #tpu.pipeline_mode<synchronous>, transform_indices = @transform_11, window_bounds = array<i64: 2, 8, 32>}, {transform_indices = @transform_12, window_bounds = array<i64: 1, 8, 128>}]} {
    %c0_i32 = arith.constant 0 : i32
    %0 = arith.cmpi eq, %arg0, %c0_i32 : i32
    %1 = arith.extui %0 : i1 to i32
    %c0_i32_0 = arith.constant 0 : i32
    %2 = arith.cmpi ne, %1, %c0_i32_0 : i32
    scf.if %2 {
      %c0_66 = arith.constant 0 : index
      %c0_67 = arith.constant 0 : index
      %c0_68 = arith.constant 0 : index
      %127 = vector.load %arg12[%c0_66, %c0_67, %c0_68] : memref<2x8x32xf32, #tpu.memory_space<vmem>>, vector<2x8x32xf32>
      %c0_69 = arith.constant 0 : index
      %c0_70 = arith.constant 0 : index
      %c0_71 = arith.constant 0 : index
      %128 = vector.load %arg15[%c0_69, %c0_70, %c0_71] : memref<2x8x32xf32, #tpu.memory_space<vmem>>, vector<2x8x32xf32>
      tpu.vector_store %arg15[%c0_69, %c0_70, %c0_71], %127 {strides = array<i32>} : memref<2x8x32xf32, #tpu.memory_space<vmem>>, vector<2x8x32xf32>,
      %c0_72 = arith.constant 0 : index
      %c0_73 = arith.constant 0 : index
      %c0_74 = arith.constant 0 : index
      %129 = vector.load %arg13[%c0_72, %c0_73, %c0_74] : memref<2x8x32xf32, #tpu.memory_space<vmem>>, vector<2x8x32xf32>
      %c0_75 = arith.constant 0 : index
      %c0_76 = arith.constant 0 : index
      %c0_77 = arith.constant 0 : index
      %130 = vector.load %arg16[%c0_75, %c0_76, %c0_77] : memref<2x8x32xf32, #tpu.memory_space<vmem>>, vector<2x8x32xf32>
      tpu.vector_store %arg16[%c0_75, %c0_76, %c0_77], %129 {strides = array<i32>} : memref<2x8x32xf32, #tpu.memory_space<vmem>>, vector<2x8x32xf32>,
      %cst_78 = arith.constant 0.000000e+00 : f32
      %131 = vector.broadcast %cst_78 : f32 to vector<8x128xf32>
      %c0_79 = arith.constant 0 : index
      %c0_80 = arith.constant 0 : index
      %132 = vector.load %arg17[%c0_79, %c0_80] : memref<8x128xf32, #tpu.memory_space<vmem>>, vector<8x128xf32>
      tpu.vector_store %arg17[%c0_79, %c0_80], %131 {strides = array<i32>} : memref<8x128xf32, #tpu.memory_space<vmem>>, vector<8x128xf32>,
    } else {
    }
    %3 = arith.index_cast %arg0 : i32 to index
    %4 = memref.load %arg1[%3] : memref<7xi32, #tpu.memory_space<smem>>
    %c0_i32_1 = arith.constant 0 : i32
    %5 = arith.cmpi ne, %4, %c0_i32_1 : i32
    %6 = arith.extui %5 : i1 to i32
    %7 = arith.sitofp %6 : i32 to f32
    %c0 = arith.constant 0 : index
    %c0_2 = arith.constant 0 : index
    %c0_3 = arith.constant 0 : index
    %8 = vector.load %arg2[%c0, %c0_2, %c0_3] : memref<1x8x128xf32, #tpu.memory_space<vmem>>, vector<1x8x128xf32>
    %9 = vector.shape_cast %8 : vector<1x8x128xf32> to vector<8x128xf32>
    %10 = vector.broadcast %7 : f32 to vector<8x128xf32>
    %11 = arith.mulf %10, %9 : vector<8x128xf32>
    %cst = arith.constant 1.000000e+00 : f32
    %12 = arith.subf %cst, %7 : f32
    %c0_4 = arith.constant 0 : index
    %c0_5 = arith.constant 0 : index
    %13 = vector.load %arg17[%c0_4, %c0_5] : memref<8x128xf32, #tpu.memory_space<vmem>>, vector<8x128xf32>
    %14 = vector.broadcast %12 : f32 to vector<8x128xf32>
    %15 = arith.mulf %14, %13 : vector<8x128xf32>
    %16 = arith.addf %11, %15 : vector<8x128xf32>
    %c0_6 = arith.constant 0 : index
    %c0_7 = arith.constant 0 : index
    %17 = vector.load %arg3[%c0_6, %c0_7] : memref<128x32xf32, #tpu.memory_space<vmem>>, vector<128x32xf32>
    %cst_8 = arith.constant dense<0.000000e+00> : vector<8x32xf32>
    %18 = tpu.matmul %16, %17, %cst_8 {dimension_numbers = #tpu.dot_dimension_numbers<[1], [0], [0], [1], [0, 0, 1, 1], [], []>} : vector<8x128xf32>, vector<128x32xf32>, vector<8x32xf32> -> vector<8x32xf32>
    %c0_9 = arith.constant 0 : index
    %c0_10 = arith.constant 0 : index
    %19 = vector.load %arg4[%c0_9, %c0_10] : memref<32x128xf32, #tpu.memory_space<vmem>>, vector<32x128xf32>
    %cst_11 = arith.constant dense<0.000000e+00> : vector<8x128xf32>
    %20 = tpu.matmul %18, %19, %cst_11 {dimension_numbers = #tpu.dot_dimension_numbers<[1], [0], [0], [1], [0, 0, 1, 1], [], []>} : vector<8x32xf32>, vector<32x128xf32>, vector<8x128xf32> -> vector<8x128xf32>
    %c0_12 = arith.constant 0 : index
    %c0_13 = arith.constant 0 : index
    %c0_14 = arith.constant 0 : index
    %21 = vector.load %arg15[%c0_12, %c0_13, %c0_14] : memref<2x8x32xf32, #tpu.memory_space<vmem>>, vector<1x8x32xf32>
    %22 = vector.shape_cast %21 : vector<1x8x32xf32> to vector<8x32xf32>
    %c0_15 = arith.constant 0 : index
    %c0_16 = arith.constant 0 : index
    %23 = vector.load %arg5[%c0_15, %c0_16] : memref<32x128xf32, #tpu.memory_space<vmem>>, vector<32x128xf32>
    %cst_17 = arith.constant dense<0.000000e+00> : vector<8x128xf32>
    %24 = tpu.matmul %22, %23, %cst_17 {dimension_numbers = #tpu.dot_dimension_numbers<[1], [0], [0], [1], [0, 0, 1, 1], [], []>} : vector<8x32xf32>, vector<32x128xf32>, vector<8x128xf32> -> vector<8x128xf32>
    %25 = arith.addf %20, %24 : vector<8x128xf32>
    %c0_18 = arith.constant 0 : index
    %c0_19 = arith.constant 0 : index
    %26 = vector.load %arg6[%c0_18, %c0_19] : memref<1x128xf32, #tpu.memory_space<vmem>>, vector<1x128xf32>
    %27 = vector.broadcast %26 : vector<1x128xf32> to vector<8x128xf32>
    %28 = arith.addf %25, %27 : vector<8x128xf32>
    %c0_20 = arith.constant 0 : index
    %c0_21 = arith.constant 0 : index
    %c0_22 = arith.constant 0 : index
    %29 = vector.load %arg16[%c0_20, %c0_21, %c0_22] : memref<2x8x32xf32, #tpu.memory_space<vmem>>, vector<1x8x32xf32>
    %30 = vector.shape_cast %29 : vector<1x8x32xf32> to vector<8x32xf32>
    %31 = vector.extract_strided_slice %28 {offsets = [0, 0], sizes = [8, 32], strides = [1, 1]} : vector<8x128xf32> to vector<8x32xf32>
    %32 = arith.negf %31 : vector<8x32xf32>
    %33 = math.exp %32 : vector<8x32xf32>
    %cst_23 = arith.constant 1.000000e+00 : f32
    %34 = vector.broadcast %cst_23 : f32 to vector<8x32xf32>
    %35 = arith.addf %34, %33 : vector<8x32xf32>
    %36 = arith.divf %34, %35 : vector<8x32xf32>
    %37 = vector.extract_strided_slice %28 {offsets = [0, 32], sizes = [8, 32], strides = [1, 1]} : vector<8x128xf32> to vector<8x32xf32>
    %38 = arith.negf %37 : vector<8x32xf32>
    %39 = math.exp %38 : vector<8x32xf32>
    %cst_24 = arith.constant 1.000000e+00 : f32
    %40 = vector.broadcast %cst_24 : f32 to vector<8x32xf32>
    %41 = arith.addf %40, %39 : vector<8x32xf32>
    %42 = arith.divf %40, %41 : vector<8x32xf32>
    %43 = vector.extract_strided_slice %28 {offsets = [0, 64], sizes = [8, 32], strides = [1, 1]} : vector<8x128xf32> to vector<8x32xf32>
    %44 = math.tanh %43 : vector<8x32xf32>
    %45 = vector.extract_strided_slice %28 {offsets = [0, 96], sizes = [8, 32], strides = [1, 1]} : vector<8x128xf32> to vector<8x32xf32>
    %46 = arith.negf %45 : vector<8x32xf32>
    %47 = math.exp %46 : vector<8x32xf32>
    %cst_25 = arith.constant 1.000000e+00 : f32
    %48 = vector.broadcast %cst_25 : f32 to vector<8x32xf32>
    %49 = arith.addf %48, %47 : vector<8x32xf32>
    %50 = arith.divf %48, %49 : vector<8x32xf32>
    %51 = arith.mulf %42, %30 : vector<8x32xf32>
    %52 = arith.mulf %36, %44 : vector<8x32xf32>
    %53 = arith.addf %51, %52 : vector<8x32xf32>
    %54 = math.tanh %53 : vector<8x32xf32>
    %55 = arith.mulf %50, %54 : vector<8x32xf32>
    %c0_26 = arith.constant 0 : index
    %c0_27 = arith.constant 0 : index
    %c0_28 = arith.constant 0 : index
    %56 = vector.load %arg15[%c0_26, %c0_27, %c0_28] : memref<2x8x32xf32, #tpu.memory_space<vmem>>, vector<1x8x32xf32>
    %57 = vector.shape_cast %56 : vector<1x8x32xf32> to vector<8x32xf32>
    %58 = vector.shape_cast %55 : vector<8x32xf32> to vector<1x8x32xf32>
    tpu.vector_store %arg15[%c0_26, %c0_27, %c0_28], %58 {strides = array<i32>} : memref<2x8x32xf32, #tpu.memory_space<vmem>>, vector<1x8x32xf32>,
    %c0_29 = arith.constant 0 : index
    %c0_30 = arith.constant 0 : index
    %c0_31 = arith.constant 0 : index
    %59 = vector.load %arg16[%c0_29, %c0_30, %c0_31] : memref<2x8x32xf32, #tpu.memory_space<vmem>>, vector<1x8x32xf32>
    %60 = vector.shape_cast %59 : vector<1x8x32xf32> to vector<8x32xf32>
    %61 = vector.shape_cast %53 : vector<8x32xf32> to vector<1x8x32xf32>
    tpu.vector_store %arg16[%c0_29, %c0_30, %c0_31], %61 {strides = array<i32>} : memref<2x8x32xf32, #tpu.memory_space<vmem>>, vector<1x8x32xf32>,
    %c0_32 = arith.constant 0 : index
    %c0_33 = arith.constant 0 : index
    %62 = vector.load %arg7[%c0_32, %c0_33] : memref<32x128xf32, #tpu.memory_space<vmem>>, vector<32x128xf32>
    %cst_34 = arith.constant dense<0.000000e+00> : vector<8x128xf32>
    %63 = tpu.matmul %55, %62, %cst_34 {dimension_numbers = #tpu.dot_dimension_numbers<[1], [0], [0], [1], [0, 0, 1, 1], [], []>} : vector<8x32xf32>, vector<32x128xf32>, vector<8x128xf32> -> vector<8x128xf32>
    %c1 = arith.constant 1 : index
    %c0_35 = arith.constant 0 : index
    %c0_36 = arith.constant 0 : index
    %64 = vector.load %arg15[%c1, %c0_35, %c0_36] : memref<2x8x32xf32, #tpu.memory_space<vmem>>, vector<1x8x32xf32>
    %65 = vector.shape_cast %64 : vector<1x8x32xf32> to vector<8x32xf32>
    %c0_37 = arith.constant 0 : index
    %c0_38 = arith.constant 0 : index
    %66 = vector.load %arg8[%c0_37, %c0_38] : memref<32x128xf32, #tpu.memory_space<vmem>>, vector<32x128xf32>
    %cst_39 = arith.constant dense<0.000000e+00> : vector<8x128xf32>
    %67 = tpu.matmul %65, %66, %cst_39 {dimension_numbers = #tpu.dot_dimension_numbers<[1], [0], [0], [1], [0, 0, 1, 1], [], []>} : vector<8x32xf32>, vector<32x128xf32>, vector<8x128xf32> -> vector<8x128xf32>
    %68 = arith.addf %63, %67 : vector<8x128xf32>
    %c0_40 = arith.constant 0 : index
    %c0_41 = arith.constant 0 : index
    %69 = vector.load %arg9[%c0_40, %c0_41] : memref<1x128xf32, #tpu.memory_space<vmem>>, vector<1x128xf32>
    %70 = vector.broadcast %69 : vector<1x128xf32> to vector<8x128xf32>
    %71 = arith.addf %68, %70 : vector<8x128xf32>
    %c1_42 = arith.constant 1 : index
    %c0_43 = arith.constant 0 : index
    %c0_44 = arith.constant 0 : index
    %72 = vector.load %arg16[%c1_42, %c0_43, %c0_44] : memref<2x8x32xf32, #tpu.memory_space<vmem>>, vector<1x8x32xf32>
    %73 = vector.shape_cast %72 : vector<1x8x32xf32> to vector<8x32xf32>
    %74 = vector.extract_strided_slice %71 {offsets = [0, 0], sizes = [8, 32], strides = [1, 1]} : vector<8x128xf32> to vector<8x32xf32>
    %75 = arith.negf %74 : vector<8x32xf32>
    %76 = math.exp %75 : vector<8x32xf32>
    %cst_45 = arith.constant 1.000000e+00 : f32
    %77 = vector.broadcast %cst_45 : f32 to vector<8x32xf32>
    %78 = arith.addf %77, %76 : vector<8x32xf32>
    %79 = arith.divf %77, %78 : vector<8x32xf32>
    %80 = vector.extract_strided_slice %71 {offsets = [0, 32], sizes = [8, 32], strides = [1, 1]} : vector<8x128xf32> to vector<8x32xf32>
    %81 = arith.negf %80 : vector<8x32xf32>
    %82 = math.exp %81 : vector<8x32xf32>
    %cst_46 = arith.constant 1.000000e+00 : f32
    %83 = vector.broadcast %cst_46 : f32 to vector<8x32xf32>
    %84 = arith.addf %83, %82 : vector<8x32xf32>
    %85 = arith.divf %83, %84 : vector<8x32xf32>
    %86 = vector.extract_strided_slice %71 {offsets = [0, 64], sizes = [8, 32], strides = [1, 1]} : vector<8x128xf32> to vector<8x32xf32>
    %87 = math.tanh %86 : vector<8x32xf32>
    %88 = vector.extract_strided_slice %71 {offsets = [0, 96], sizes = [8, 32], strides = [1, 1]} : vector<8x128xf32> to vector<8x32xf32>
    %89 = arith.negf %88 : vector<8x32xf32>
    %90 = math.exp %89 : vector<8x32xf32>
    %cst_47 = arith.constant 1.000000e+00 : f32
    %91 = vector.broadcast %cst_47 : f32 to vector<8x32xf32>
    %92 = arith.addf %91, %90 : vector<8x32xf32>
    %93 = arith.divf %91, %92 : vector<8x32xf32>
    %94 = arith.mulf %85, %73 : vector<8x32xf32>
    %95 = arith.mulf %79, %87 : vector<8x32xf32>
    %96 = arith.addf %94, %95 : vector<8x32xf32>
    %97 = math.tanh %96 : vector<8x32xf32>
    %98 = arith.mulf %93, %97 : vector<8x32xf32>
    %c1_48 = arith.constant 1 : index
    %c0_49 = arith.constant 0 : index
    %c0_50 = arith.constant 0 : index
    %99 = vector.load %arg15[%c1_48, %c0_49, %c0_50] : memref<2x8x32xf32, #tpu.memory_space<vmem>>, vector<1x8x32xf32>
    %100 = vector.shape_cast %99 : vector<1x8x32xf32> to vector<8x32xf32>
    %101 = vector.shape_cast %98 : vector<8x32xf32> to vector<1x8x32xf32>
    tpu.vector_store %arg15[%c1_48, %c0_49, %c0_50], %101 {strides = array<i32>} : memref<2x8x32xf32, #tpu.memory_space<vmem>>, vector<1x8x32xf32>,
    %c1_51 = arith.constant 1 : index
    %c0_52 = arith.constant 0 : index
    %c0_53 = arith.constant 0 : index
    %102 = vector.load %arg16[%c1_51, %c0_52, %c0_53] : memref<2x8x32xf32, #tpu.memory_space<vmem>>, vector<1x8x32xf32>
    %103 = vector.shape_cast %102 : vector<1x8x32xf32> to vector<8x32xf32>
    %104 = vector.shape_cast %96 : vector<8x32xf32> to vector<1x8x32xf32>
    tpu.vector_store %arg16[%c1_51, %c0_52, %c0_53], %104 {strides = array<i32>} : memref<2x8x32xf32, #tpu.memory_space<vmem>>, vector<1x8x32xf32>,
    %c0_54 = arith.constant 0 : index
    %c0_55 = arith.constant 0 : index
    %105 = vector.load %arg10[%c0_54, %c0_55] : memref<32x128xf32, #tpu.memory_space<vmem>>, vector<32x128xf32>
    %cst_56 = arith.constant dense<0.000000e+00> : vector<8x128xf32>
    %106 = tpu.matmul %98, %105, %cst_56 {dimension_numbers = #tpu.dot_dimension_numbers<[1], [0], [0], [1], [0, 0, 1, 1], [], []>} : vector<8x32xf32>, vector<32x128xf32>, vector<8x128xf32> -> vector<8x128xf32>
    %c0_57 = arith.constant 0 : index
    %c0_58 = arith.constant 0 : index
    %107 = vector.load %arg11[%c0_57, %c0_58] : memref<1x128xf32, #tpu.memory_space<vmem>>, vector<1x128xf32>
    %108 = vector.broadcast %107 : vector<1x128xf32> to vector<8x128xf32>
    %109 = arith.addf %106, %108 : vector<8x128xf32>
    %c0_59 = arith.constant 0 : index
    %c0_60 = arith.constant 0 : index
    %c0_61 = arith.constant 0 : index
    %110 = vector.load %arg14[%c0_59, %c0_60, %c0_61] : memref<1x8x128xf32, #tpu.memory_space<vmem>>, vector<1x8x128xf32>
    %111 = vector.shape_cast %110 : vector<1x8x128xf32> to vector<8x128xf32>
    %112 = vector.shape_cast %109 : vector<8x128xf32> to vector<1x8x128xf32>
    tpu.vector_store %arg14[%c0_59, %c0_60, %c0_61], %112 {strides = array<i32>} : memref<1x8x128xf32, #tpu.memory_space<vmem>>, vector<1x8x128xf32>,
    %113 = tpu.iota {dimensions = array<i32: 1>} : vector<8x128xi32>
    %cst_62 = arith.constant dense<0xFF800000> : vector<8xf32>
    %114 = vector.multi_reduction <maximumf>, %109, %cst_62 [1] : vector<8x128xf32> to vector<8xf32>
    %115 = vector.shape_cast %114 : vector<8xf32> to vector<8x1xf32>
    %116 = vector.broadcast %115 : vector<8x1xf32> to vector<8x128xf32>
    %117 = arith.cmpf oeq, %109, %116 : vector<8x128xf32>
    %c128_i32 = arith.constant 128 : i32
    %118 = vector.broadcast %c128_i32 : i32 to vector<8x128xi32>
    %119 = arith.select %117, %113, %118 : vector<8x128xi1>, vector<8x128xi32>
    %cst_63 = arith.constant dense<2147483647> : vector<8xi32>
    %120 = vector.multi_reduction <minsi>, %119, %cst_63 [1] : vector<8x128xi32> to vector<8xi32>
    %121 = vector.shape_cast %120 : vector<8xi32> to vector<8x1xi32>
    %122 = vector.broadcast %121 : vector<8x1xi32> to vector<8x128xi32>
    %123 = arith.cmpi eq, %113, %122 : vector<8x128xi32>
    %124 = arith.extui %123 : vector<8x128xi1> to vector<8x128xi32>
    %125 = arith.sitofp %124 : vector<8x128xi32> to vector<8x128xf32>
    %c0_64 = arith.constant 0 : index
    %c0_65 = arith.constant 0 : index
    %126 = vector.load %arg17[%c0_64, %c0_65] : memref<8x128xf32, #tpu.memory_space<vmem>>, vector<8x128xf32>
    tpu.vector_store %arg17[%c0_64, %c0_65], %125 {strides = array<i32>} : memref<8x128xf32, #tpu.memory_space<vmem>>, vector<8x128xf32>,
    return
  }
  func.func @transform_0(%arg0: i32, %arg1: memref<7xi32, #tpu.memory_space<smem>>) -> (i32, i32, i32) {
    %c0_i32 = arith.constant 0 : i32
    %c0_i32_0 = arith.constant 0 : i32
    %c0_i32_1 = arith.constant 0 : i32
    return %arg0, %c0_i32, %c0_i32_0 : i32, i32, i32
  }
  func.func @transform_1(%arg0: i32, %arg1: memref<7xi32, #tpu.memory_space<smem>>) -> (i32, i32) {
    %c0_i32 = arith.constant 0 : i32
    %c0_i32_0 = arith.constant 0 : i32
    %c0_i32_1 = arith.constant 0 : i32
    return %c0_i32, %c0_i32_0 : i32, i32
  }
  func.func @transform_2(%arg0: i32, %arg1: memref<7xi32, #tpu.memory_space<smem>>) -> (i32, i32) {
    %c0_i32 = arith.constant 0 : i32
    %c0_i32_0 = arith.constant 0 : i32
    %c0_i32_1 = arith.constant 0 : i32
    return %c0_i32, %c0_i32_0 : i32, i32
  }
  func.func @transform_3(%arg0: i32, %arg1: memref<7xi32, #tpu.memory_space<smem>>) -> (i32, i32) {
    %c0_i32 = arith.constant 0 : i32
    %c0_i32_0 = arith.constant 0 : i32
    %c0_i32_1 = arith.constant 0 : i32
    return %c0_i32, %c0_i32_0 : i32, i32
  }
  func.func @transform_4(%arg0: i32, %arg1: memref<7xi32, #tpu.memory_space<smem>>) -> (i32, i32) {
    %c0_i32 = arith.constant 0 : i32
    %c0_i32_0 = arith.constant 0 : i32
    %c0_i32_1 = arith.constant 0 : i32
    return %c0_i32, %c0_i32_0 : i32, i32
  }
  func.func @transform_5(%arg0: i32, %arg1: memref<7xi32, #tpu.memory_space<smem>>) -> (i32, i32) {
    %c0_i32 = arith.constant 0 : i32
    %c0_i32_0 = arith.constant 0 : i32
    %c0_i32_1 = arith.constant 0 : i32
    return %c0_i32, %c0_i32_0 : i32, i32
  }
  func.func @transform_6(%arg0: i32, %arg1: memref<7xi32, #tpu.memory_space<smem>>) -> (i32, i32) {
    %c0_i32 = arith.constant 0 : i32
    %c0_i32_0 = arith.constant 0 : i32
    %c0_i32_1 = arith.constant 0 : i32
    return %c0_i32, %c0_i32_0 : i32, i32
  }
  func.func @transform_7(%arg0: i32, %arg1: memref<7xi32, #tpu.memory_space<smem>>) -> (i32, i32) {
    %c0_i32 = arith.constant 0 : i32
    %c0_i32_0 = arith.constant 0 : i32
    %c0_i32_1 = arith.constant 0 : i32
    return %c0_i32, %c0_i32_0 : i32, i32
  }
  func.func @transform_8(%arg0: i32, %arg1: memref<7xi32, #tpu.memory_space<smem>>) -> (i32, i32) {
    %c0_i32 = arith.constant 0 : i32
    %c0_i32_0 = arith.constant 0 : i32
    %c0_i32_1 = arith.constant 0 : i32
    return %c0_i32, %c0_i32_0 : i32, i32
  }
  func.func @transform_9(%arg0: i32, %arg1: memref<7xi32, #tpu.memory_space<smem>>) -> (i32, i32) {
    %c0_i32 = arith.constant 0 : i32
    %c0_i32_0 = arith.constant 0 : i32
    %c0_i32_1 = arith.constant 0 : i32
    return %c0_i32, %c0_i32_0 : i32, i32
  }
  func.func @transform_10(%arg0: i32, %arg1: memref<7xi32, #tpu.memory_space<smem>>) -> (i32, i32, i32) {
    %c0_i32 = arith.constant 0 : i32
    %c0_i32_0 = arith.constant 0 : i32
    %c0_i32_1 = arith.constant 0 : i32
    %c0_i32_2 = arith.constant 0 : i32
    return %c0_i32, %c0_i32_0, %c0_i32_1 : i32, i32, i32
  }
  func.func @transform_11(%arg0: i32, %arg1: memref<7xi32, #tpu.memory_space<smem>>) -> (i32, i32, i32) {
    %c0_i32 = arith.constant 0 : i32
    %c0_i32_0 = arith.constant 0 : i32
    %c0_i32_1 = arith.constant 0 : i32
    %c0_i32_2 = arith.constant 0 : i32
    return %c0_i32, %c0_i32_0, %c0_i32_1 : i32, i32, i32
  }
  func.func @transform_12(%arg0: i32, %arg1: memref<7xi32, #tpu.memory_space<smem>>) -> (i32, i32, i32) {
    %c0_i32 = arith.constant 0 : i32
    %c0_i32_0 = arith.constant 0 : i32
    %c0_i32_1 = arith.constant 0 : i32
    return %arg0, %c0_i32, %c0_i32_0 : i32, i32, i32
  }
}

</mosaic_0001>

<llo_original>
// kernel: seq2seq_forward.2
$region0: #{seq2seq_forward.2}
  #allocation0 [shape = 'u32[]', space=smem, size = 0x4, offset = 0x4, fixed_abs, tag = 'smem constant byte address 0x4 - core index']
  #allocation1 [shape = 'u32[72,128]{1,0:T(1,128)}', space=vmem, size = 0x9000, scoped, tag = 'internal scratch']
  %s0 = inlined_call_operand.vmem [shape: f32[8,8,128], index: 0, kind: input, shape index: {}]
  %s1 = inlined_call_operand.vmem [shape: f32[32,128], index: 1, kind: input, shape index: {}]
  %s2 = inlined_call_operand.vmem [shape: f32[32,128], index: 2, kind: input, shape index: {}]
  %s3 = inlined_call_operand.vmem [shape: f32[32,128], index: 3, kind: input, shape index: {}]
  %s4 = inlined_call_operand.vmem [shape: f32[1,128], index: 4, kind: input, shape index: {}]
  %s5 = inlined_call_operand.vmem [shape: f32[2,8,32], index: 5, kind: output, shape index: {0}]
  %s6 = inlined_call_operand.vmem [shape: f32[2,8,32], index: 6, kind: output, shape index: {1}]
  %7 = xla_tuple %s5, %s6
  %s8 = sld [smem:[#allocation0]]
  $region65: #{seq2seq_forward.2} parent=0
    _
  %s10 = ssub.s32 1, %s8
  %s11 = scalar_select 0, %s10, %s8
  loop: start=0, step=1, limit=10
  $region2: #{seq2seq_forward.2} parent=0 // loop_pre_header
    _
  $region3: #{seq2seq_forward.2} parent=0 // loop_header
    %s13 = sphi 0, %s17
    %p14 = scmp.ge.s32.totalorder %s13, 10
    %s23 = sphi 0, %s25
    %s26 = sphi 0, %s23
    %s27 = sphi 0, %s26
    %s43 = sphi 0, %s27
    %s47 = sphi 0, %s47
    %s49 = sphi 0, %s47
    %s50 = sphi 0, %s49
    %s64 = sphi 0, %s50
    %s68 = sphi 0, %s68
    %s70 = sphi 0, %s68
    %s71 = sphi 0, %s70
    %s85 = sphi 0, %s71
    %s89 = sphi 0, %s89
    %s91 = sphi 0, %s89
    %s92 = sphi 0, %s91
    %s106 = sphi 0, %s92
    %s110 = sphi 0, %s110
    %s112 = sphi 0, %s110
    %s113 = sphi 0, %s112
    %s127 = sphi 0, %s113
    %s131 = sphi 0, %s131
    %s133 = sphi 0, %s131
    %s134 = sphi 0, %s133
    %s148 = sphi 0, %s134
    %s152 = sphi 0, %s152
    %s154 = sphi 0, %s152
    %s155 = sphi 0, %s154
    %s169 = sphi 0, %s155
  $region4: #{seq2seq_forward.2} parent=0 // loop_header_branch
    %16 = sbr.rel (%p14) target = $region8
  $region5: #{seq2seq_forward.2} parent=0 // loop_body
    %s18 = ssub.s32 %s13, 1
    %s19 = ssub.s32 %s13, 2
    %s20 = sadd.s32 %s13, 1
    %s21 = ssub.s32 %s13, %s20
    %p22 = scmp.eq.s32.totalorder %s21, 0
    %s24 = sadd.s32 %s23, 1
    %s25 = scalar_select %p22, %s23, %s24
    %p28 = pneg %p22
    %p29 = scmp.eq.s32.totalorder %s13, 7
    %p30 = por %p28, %p29
    %p31 = scmp.ne.s32.totalorder %s23, %s26
    %p32 = scmp.eq.s32.totalorder %s13, 0
    %p33 = por %p31, %p32
    %p34 = scmp.ne.s32.totalorder %s23, %s26
    %p35 = scmp.eq.s32.totalorder %s18, 7
    %p36 = por %p34, %p35
    %p37 = scmp.ne.s32.totalorder %s26, %s27
    %p38 = scmp.eq.s32.totalorder %s18, 0
    %p39 = por %p37, %p38
    %p40 = scmp.ne.s32.totalorder %s26, %s27
    %p41 = scmp.eq.s32.totalorder %s19, 7
    %p42 = por %p40, %p41
    %p44 = scmp.ne.s32.totalorder %s27, %s43
    %p45 = scmp.eq.s32.totalorder %s19, 0
    %p46 = por %p44, %p45
    %s48 = sadd.s32 %s47, 1
    %p51 = scmp.eq.s32.totalorder %s13, 7
    %p52 = scmp.ne.s32.totalorder %s47, %s49
    %p53 = scmp.eq.s32.totalorder %s13, 0
    %p54 = por %p52, %p53
    %p55 = scmp.ne.s32.totalorder %s47, %s49
    %p56 = scmp.eq.s32.totalorder %s18, 7
    %p57 = por %p55, %p56
    %p58 = scmp.ne.s32.totalorder %s49, %s50
    %p59 = scmp.eq.s32.totalorder %s18, 0
    %p60 = por %p58, %p59
    %p61 = scmp.ne.s32.totalorder %s49, %s50
    %p62 = scmp.eq.s32.totalorder %s19, 7
    %p63 = por %p61, %p62
    %p65 = scmp.ne.s32.totalorder %s50, %s64
    %p66 = scmp.eq.s32.totalorder %s19, 0
    %p67 = por %p65, %p66
    %s69 = sadd.s32 %s68, 1
    %p72 = scmp.eq.s32.totalorder %s13, 7
    %p73 = scmp.ne.s32.totalorder %s68, %s70
    %p74 = scmp.eq.s32.totalorder %s13, 0
    %p75 = por %p73, %p74
    %p76 = scmp.ne.s32.totalorder %s68, %s70
    %p77 = scmp.eq.s32.totalorder %s18, 7
    %p78 = por %p76, %p77
    %p79 = scmp.ne.s32.totalorder %s70, %s71
    %p80 = scmp.eq.s32.totalorder %s18, 0
    %p81 = por %p79, %p80
    %p82 = scmp.ne.s32.totalorder %s70, %s71
    %p83 = scmp.eq.s32.totalorder %s19, 7
    %p84 = por %p82, %p83
    %p86 = scmp.ne.s32.totalorder %s71, %s85
    %p87 = scmp.eq.s32.totalorder %s19, 0
    %p88 = por %p86, %p87
    %s90 = sadd.s32 %s89, 1
    %p93 = scmp.eq.s32.totalorder %s13, 7
    %p94 = scmp.ne.s32.totalorder %s89, %s91
    %p95 = scmp.eq.s32.totalorder %s13, 0
    %p96 = por %p94, %p95
    %p97 = scmp.ne.s32.totalorder %s89, %s91
    %p98 = scmp.eq.s32.totalorder %s18, 7
    %p99 = por %p97, %p98
    %p100 = scmp.ne.s32.totalorder %s91, %s92
    %p101 = scmp.eq.s32.totalorder %s18, 0
    %p102 = por %p100, %p101
    %p103 = scmp.ne.s32.totalorder %s91, %s92
    %p104 = scmp.eq.s32.totalorder %s19, 7
    %p105 = por %p103, %p104
    %p107 = scmp.ne.s32.totalorder %s92, %s106
    %p108 = scmp.eq.s32.totalorder %s19, 0
    %p109 = por %p107, %p108
    %s111 = sadd.s32 %s110, 1
    %p114 = scmp.eq.s32.totalorder %s13, 7
    %p115 = scmp.ne.s32.totalorder %s110, %s112
    %p116 = scmp.eq.s32.totalorder %s13, 0
    %p117 = por %p115, %p116
    %p118 = scmp.ne.s32.totalorder %s110, %s112
    %p119 = scmp.eq.s32.totalorder %s18, 7
    %p120 = por %p118, %p119
    %p121 = scmp.ne.s32.totalorder %s112, %s113
    %p122 = scmp.eq.s32.totalorder %s18, 0
    %p123 = por %p121, %p122
    %p124 = scmp.ne.s32.totalorder %s112, %s113
    %p125 = scmp.eq.s32.totalorder %s19, 7
    %p126 = por %p124, %p125
    %p128 = scmp.ne.s32.totalorder %s113, %s127
    %p129 = scmp.eq.s32.totalorder %s19, 0
    %p130 = por %p128, %p129
    %s132 = sadd.s32 %s131, 1
    %p135 = scmp.eq.s32.totalorder %s13, 7
    %p136 = scmp.ne.s32.totalorder %s131, %s133
    %p137 = scmp.eq.s32.totalorder %s13, 0
    %p138 = por %p136, %p137
    %p139 = scmp.ne.s32.totalorder %s131, %s133
    %p140 = scmp.eq.s32.totalorder %s18, 7
    %p141 = por %p139, %p140
    %p142 = scmp.ne.s32.totalorder %s133, %s134
    %p143 = scmp.eq.s32.totalorder %s18, 0
    %p144 = por %p142, %p143
    %p145 = scmp.ne.s32.totalorder %s133, %s134
    %p146 = scmp.eq.s32.totalorder %s19, 7
    %p147 = por %p145, %p146
    %p149 = scmp.ne.s32.totalorder %s134, %s148
    %p150 = scmp.eq.s32.totalorder %s19, 0
    %p151 = por %p149, %p150
    %s153 = sadd.s32 %s152, 1
    %p156 = scmp.eq.s32.totalorder %s13, 7
    %p157 = scmp.ne.s32.totalorder %s152, %s154
    %p158 = scmp.eq.s32.totalorder %s13, 0
    %p159 = por %p157, %p158
    %p160 = scmp.ne.s32.totalorder %s152, %s154
    %p161 = scmp.eq.s32.totalorder %s18, 7
    %p162 = por %p160, %p161
    %p163 = scmp.ne.s32.totalorder %s154, %s155
    %p164 = scmp.eq.s32.totalorder %s18, 0
    %p165 = por %p163, %p164
    %p166 = scmp.ne.s32.totalorder %s154, %s155
    %p167 = scmp.eq.s32.totalorder %s19, 7
    %p168 = por %p166, %p167
    %p170 = scmp.ne.s32.totalorder %s155, %s169
    %p171 = scmp.eq.s32.totalorder %s19, 0
    %p172 = por %p170, %p171
    %p173 = scmp.le.s32.totalorder 1, %s13
    %p174 = scmp.lt.s32.totalorder %s13, 9
    %p175 = pnand %p173, %p174
    %p176 = pneg %p175
    // Predicated region
    $region9: #{seq2seq_forward.2} parent=5 // pred_check
      _
    $region10: #{seq2seq_forward.2} parent=5 // pred_check_branch
      %178 = sbr.rel (%p175) target = $region12
    $region11: #{seq2seq_forward.2} parent=5 // pred_region
      %s179 = ssub.s32 %s13, 1
      // Predicated region
      $region13: #{seq2seq_forward.2} parent=11 // pred_check
        %p180 = pneg %p60
      $region14: #{seq2seq_forward.2} parent=11 // pred_check_branch
        %182 = sbr.rel (%p180) target = $region16
      $region15: #{seq2seq_forward.2} parent=11 // pred_region
        _
      $region16: #{seq2seq_forward.2} parent=11 // pred_fallthru
        _
      // Predicated region
      $region17: #{seq2seq_forward.2} parent=11 // pred_check
        %p183 = pneg %p81
      $region18: #{seq2seq_forward.2} parent=11 // pred_check_branch
        %185 = sbr.rel (%p183) target = $region20
      $region19: #{seq2seq_forward.2} parent=11 // pred_region
        _
      $region20: #{seq2seq_forward.2} parent=11 // pred_fallthru
        _
      // Predicated region
      $region21: #{seq2seq_forward.2} parent=11 // pred_check
        %p186 = pneg %p102
      $region22: #{seq2seq_forward.2} parent=11 // pred_check_branch
        %188 = sbr.rel (%p186) target = $region24
      $region23: #{seq2seq_forward.2} parent=11 // pred_region
        _
      $region24: #{seq2seq_forward.2} parent=11 // pred_fallthru
        _
      // Predicated region
      $region25: #{seq2seq_forward.2} parent=11 // pred_check
        %p189 = pneg %p123
      $region26: #{seq2seq_forward.2} parent=11 // pred_check_branch
        %191 = sbr.rel (%p189) target = $region28
      $region27: #{seq2seq_forward.2} parent=11 // pred_region
        _
      $region28: #{seq2seq_forward.2} parent=11 // pred_fallthru
        _
    $region12: #{seq2seq_forward.2} parent=5 // pred_fallthru
      _
    %p192 = scmp.lt.s32.totalorder %s13, 8
    // Predicated region
    $region29: #{seq2seq_forward.2} parent=5 // pred_check
      %p193 = pneg %p192
    $region30: #{seq2seq_forward.2} parent=5 // pred_check_branch
      %195 = sbr.rel (%p193) target = $region32
    $region31: #{seq2seq_forward.2} parent=5 // pred_region
      // Predicated region
      $region33: #{seq2seq_forward.2} parent=31 // pred_check
        %p196 = pneg %p33
      $region34: #{seq2seq_forward.2} parent=31 // pred_check_branch
        %198 = sbr.rel (%p196) target = $region36
      $region35: #{seq2seq_forward.2} parent=31 // pred_region
        %p199 = scmp.lt.s32.totalorder %s13, 7
        %s200 = scalar_select %p199, %s13, 7
        %s201 = smul.addr %s200, 8
        %s202 = scalar_lea.vmem %s0, %s201
      $region36: #{seq2seq_forward.2} parent=31 // pred_fallthru
        _
    $region32: #{seq2seq_forward.2} parent=5 // pred_fallthru
      _
    %p203 = scmp.le.s32.totalorder 1, %s13
    %p204 = scmp.lt.s32.totalorder %s13, 9
    %p205 = pnand %p203, %p204
    %p206 = pneg %p205
    // Predicated region
    $region37: #{seq2seq_forward.2} parent=5 // pred_check
      _
    $region38: #{seq2seq_forward.2} parent=5 // pred_check_branch
      %208 = sbr.rel (%p205) target = $region40
    $region39: #{seq2seq_forward.2} parent=5 // pred_region
      %s209 = ssub.s32 %s13, 1
      %p210 = scmp.lt.s32.totalorder %s18, 7
      %s211 = scalar_select %p210, %s18, 7
      %s212 = smul.addr %s211, 8
      %s213 = scalar_lea.vmem %s0, %s212
      %p214 = pneg %p39
      %p215 = pneg %p36
      %p216 = pneg %p60
      %p217 = pneg %p57
      %p218 = pneg %p81
      %p219 = pneg %p78
      %p220 = pneg %p102
      %p221 = pneg %p99
      %p222 = pneg %p123
      %p223 = pneg %p120
      %p224 = pneg %p144
      %p225 = pneg %p141
      %p226 = pneg %p165
      %p227 = pneg %p162
      %p228 = scmp.lt.s32.totalorder %s18, 7
      %s229 = scalar_select %p228, %s18, 7
      %s230 = smul.addr %s229, 8
      %s231 = scalar_lea.vmem %s0, %s230
      %p232 = scmp.eq.s32.totalorder %s18, 0
      // Predicated region
      $region41: #{seq2seq_forward.2} parent=39 // pred_check
        %p233 = pneg %p232
      $region42: #{seq2seq_forward.2} parent=39 // pred_check_branch
        %235 = sbr.rel (%p233) target = $region44
      $region43: #{seq2seq_forward.2} parent=39 // pred_region
        %vm236 = vcmask 261120
        %237 = vst.msk [vmem:[%s5] sm:$0xff] %vm236, 0.0
        %238 = vst.msk [vmem:[%s5 + $0x8] sm:$0xff] %vm236, 0.0
        %239 = vst.msk [vmem:[%s6] sm:$0xff] %vm236, 0.0
        %240 = vst.msk [vmem:[%s6 + $0x8] sm:$0xff] %vm236, 0.0
      $region44: #{seq2seq_forward.2} parent=39 // pred_fallthru
        _
      %v241 = vld [vmem:[%s231] sm:$0xff]
      %v242 = vld [vmem:[%s5] sm:$0xff]
      %v243 = vld [vmem:[%s1] sm:$0xff]
      %v244 = vld [vmem:[%s1 + $0x8] sm:$0xff]
      %v245 = vld [vmem:[%s1 + $0x10] sm:$0xff]
      %v246 = vld [vmem:[%s1 + $0x18] sm:$0xff]
      %vm247 = vcmask 261120
      %v249 = vsel %vm247, %v242, 0
      %251 = vmatpush.msra.mxu0 0.0
      %252 = vmatpush.msra.mxu0 0.0
      %253 = vmatpush.msra.mxu0 0.0
      %254 = vmatpush.msra.mxu0 0.0
      %255 = vmatpush.msra.mxu0 0.0
      %256 = vmatpush.msra.mxu0 0.0
      %257 = vmatpush.msra.mxu0 0.0
      %258 = vmatpush.msra.mxu0 0.0
      %259 = vmatpush.msra.mxu0 0.0
      %260 = vmatpush.msra.mxu0 0.0
      %261 = vmatpush.msra.mxu0 0.0
      %262 = vmatpush.msra.mxu0 0.0
      %263 = vmatpush.msra.mxu0 %v246
      %264 = vmatpush.msra.mxu0 %v245
      %265 = vmatpush.msra.mxu0 %v244
      %266 = vmatpush.msra.mxu0 %v243
      %267 = vmatmul.f32.gmra.mxu0 %v249
      %v268 = vpop.f32.mrf.mxu0
      %v269 = vadd.f32 0.0, %v268
      %270 = vdwg.mxu0
      %v271 = vadd.f32 %v241, %v269
      %v272 = vld [vmem:[%s6] sm:$0xff]
      %v273 = vxor.u32 %v271, 2147483648
      %v274 = vmul.f32 %v273, 1.442695
      %v275 = vpow.pop %v274
      %v276 = vadd.f32 %v275, 1.0
      %v277 = vrcp.pop %v276
      %v278 = vmul.f32 %v276, %v277
      %v279 = vsub.f32 1.0, %v278
      %v280 = vmul.f32 %v277, %v279
      %v281 = vadd.f32 %v277, %v280
      %vm282 = vweird.f32 %v276
      %vm283 = vweird.f32 %v277
      %vm284 = vmor %vm282, %vm283
      %v285 = vsel %vm284, %v277, %v281
      %v286 = vand.u32 2147483647, %v276
      %vm287 = vcmp.eq.f32.partialorder %v286, 8.507059e+37
      %v288 = vand.u32 %v276, 2147483648
      %v289 = vor.u32 1.1754944e-38, %v288
      %v290 = vsel %vm287, %v289, %v285
      %v291 = vmul.f32 1.0, %v290
      %v292 = vtanh.pop %v271
      %294 = vrot.lane.b32.xlu0 %v272, 32
      %v295 = vpop.permute.xlu0 %294
      %v297 = vmul.f32 %v291, %v295
      %299 = vrot.lane.b32.xlu0 %v292, 64
      %v300 = vpop.permute.xlu0 %299
      %v302 = vmul.f32 %v291, %v300
      %304 = vrot.lane.b32.xlu0 %v302, 32
      %v305 = vpop.permute.xlu0 %304
      %v307 = vadd.f32 %v297, %v305
      %v308 = vtanh.pop %v307
      %310 = vrot.lane.b32.xlu0 %v308, 64
      %v311 = vpop.permute.xlu0 %310
      %v313 = vmul.f32 %v291, %v311
      %315 = vrot.lane.b32.xlu0 %v313, 32
      %v316 = vpop.permute.xlu0 %315
      %318 = vst.msk [vmem:[%s5] sm:$0xff] %vm247, %v316
      %320 = vrot.lane.b32.xlu0 %v307, 96
      %v321 = vpop.permute.xlu0 %320
      %323 = vst.msk [vmem:[%s6] sm:$0xff] %vm247, %v321
      %v324 = vld [vmem:[%s2] sm:$0xff]
      %v325 = vld [vmem:[%s2 + $0x8] sm:$0xff]
      %v326 = vld [vmem:[%s2 + $0x10] sm:$0xff]
      %v327 = vld [vmem:[%s2 + $0x18] sm:$0xff]
      %s328 = scalar_lea.vmem %s5, 8
      %v329 = vld [vmem:[%s328] sm:$0xff]
      %v330 = vld [vmem:[%s3] sm:$0xff]
      %v331 = vld [vmem:[%s3 + $0x8] sm:$0xff]
      %v332 = vld [vmem:[%s3 + $0x10] sm:$0xff]
      %v333 = vld [vmem:[%s3 + $0x18] sm:$0xff]
      %v335 = vsel %vm247, %v329, 0
      %337 = vmatpush.msra.mxu0 0.0
      %338 = vmatpush.msra.mxu0 0.0
      %339 = vmatpush.msra.mxu0 0.0
      %340 = vmatpush.msra.mxu0 0.0
      %341 = vmatpush.msra.mxu0 0.0
      %342 = vmatpush.msra.mxu0 0.0
      %343 = vmatpush.msra.mxu0 0.0
      %344 = vmatpush.msra.mxu0 0.0
      %345 = vmatpush.msra.mxu0 0.0
      %346 = vmatpush.msra.mxu0 0.0
      %347 = vmatpush.msra.mxu0 0.0
      %348 = vmatpush.msra.mxu0 0.0
      %349 = vmatpush.msra.mxu0 %v333
      %350 = vmatpush.msra.mxu0 %v332
      %351 = vmatpush.msra.mxu0 %v331
      %352 = vmatpush.msra.mxu0 %v330
      %353 = vmatmul.f32.gmra.mxu0 %v335
      %v354 = vpop.f32.mrf.mxu0
      %v355 = vadd.f32 0.0, %v354
      %356 = vdwg.mxu0
      %v357 = vsel %vm247, %v316, 0
      %359 = vmatpush.msra.mxu0 0.0
      %360 = vmatpush.msra.mxu0 0.0
      %361 = vmatpush.msra.mxu0 0.0
      %362 = vmatpush.msra.mxu0 0.0
      %363 = vmatpush.msra.mxu0 0.0
      %364 = vmatpush.msra.mxu0 0.0
      %365 = vmatpush.msra.mxu0 0.0
      %366 = vmatpush.msra.mxu0 0.0
      %367 = vmatpush.msra.mxu0 0.0
      %368 = vmatpush.msra.mxu0 0.0
      %369 = vmatpush.msra.mxu0 0.0
      %370 = vmatpush.msra.mxu0 0.0
      %371 = vmatpush.msra.mxu0 %v327
      %372 = vmatpush.msra.mxu0 %v326
      %373 = vmatpush.msra.mxu0 %v325
      %374 = vmatpush.msra.mxu0 %v324
      %375 = vmatmul.f32.gmra.mxu0 %v357
      %v376 = vpop.f32.mrf.mxu0
      %v377 = vadd.f32 %v355, %v376
      %378 = vdwg.mxu0
      %v379 = vld [vmem:[%s4] sm:$0x1]
      %v381 = vperm.slane %v379, 0
      %v383 = vadd.f32 %v377, %v381
      %s384 = scalar_lea.vmem %s6, 8
      %v385 = vld [vmem:[%s384] sm:$0xff]
      %v386 = vxor.u32 %v383, 2147483648
      %v387 = vmul.f32 %v386, 1.442695
      %v388 = vpow.pop %v387
      %v389 = vadd.f32 %v388, 1.0
      %v390 = vrcp.pop %v389
      %v391 = vmul.f32 %v389, %v390
      %v392 = vsub.f32 1.0, %v391
      %v393 = vmul.f32 %v390, %v392
      %v394 = vadd.f32 %v390, %v393
      %vm395 = vweird.f32 %v389
      %vm396 = vweird.f32 %v390
      %vm397 = vmor %vm395, %vm396
      %v398 = vsel %vm397, %v390, %v394
      %v399 = vand.u32 2147483647, %v389
      %vm400 = vcmp.eq.f32.partialorder %v399, 8.507059e+37
      %v401 = vand.u32 %v389, 2147483648
      %v402 = vor.u32 1.1754944e-38, %v401
      %v403 = vsel %vm400, %v402, %v398
      %v404 = vmul.f32 1.0, %v403
      %v405 = vtanh.pop %v383
      %407 = vrot.lane.b32.xlu0 %v385, 32
      %v408 = vpop.permute.xlu0 %407
      %v410 = vmul.f32 %v404, %v408
      %412 = vrot.lane.b32.xlu0 %v405, 64
      %v413 = vpop.permute.xlu0 %412
      %v415 = vmul.f32 %v404, %v413
      %417 = vrot.lane.b32.xlu0 %v415, 32
      %v418 = vpop.permute.xlu0 %417
      %v420 = vadd.f32 %v410, %v418
      %v421 = vtanh.pop %v420
      %423 = vrot.lane.b32.xlu0 %v421, 64
      %v424 = vpop.permute.xlu0 %423
      %v426 = vmul.f32 %v404, %v424
      %428 = vrot.lane.b32.xlu0 %v426, 32
      %v429 = vpop.permute.xlu0 %428
      %431 = vst.msk [vmem:[%s328] sm:$0xff] %vm247, %v429
      %433 = vrot.lane.b32.xlu0 %v420, 96
      %v434 = vpop.permute.xlu0 %433
      %436 = vst.msk [vmem:[%s384] sm:$0xff] %vm247, %v434
      // Predicated region
      $region45: #{seq2seq_forward.2} parent=39 // pred_check
        %p437 = pneg %p141
      $region46: #{seq2seq_forward.2} parent=39 // pred_check_branch
        %439 = sbr.rel (%p437) target = $region48
      $region47: #{seq2seq_forward.2} parent=39 // pred_region
        _
      $region48: #{seq2seq_forward.2} parent=39 // pred_fallthru
        _
      // Predicated region
      $region49: #{seq2seq_forward.2} parent=39 // pred_check
        %p440 = pneg %p162
      $region50: #{seq2seq_forward.2} parent=39 // pred_check_branch
        %442 = sbr.rel (%p440) target = $region52
      $region51: #{seq2seq_forward.2} parent=39 // pred_region
        _
      $region52: #{seq2seq_forward.2} parent=39 // pred_fallthru
        _
      // Predicated region
      $region53: #{seq2seq_forward.2} parent=39 // pred_check
        %p443 = pneg %p141
      $region54: #{seq2seq_forward.2} parent=39 // pred_check_branch
        %445 = sbr.rel (%p443) target = $region56
      $region55: #{seq2seq_forward.2} parent=39 // pred_region
        _
      $region56: #{seq2seq_forward.2} parent=39 // pred_fallthru
        _
      // Predicated region
      $region57: #{seq2seq_forward.2} parent=39 // pred_check
        %p446 = pneg %p162
      $region58: #{seq2seq_forward.2} parent=39 // pred_check_branch
        %448 = sbr.rel (%p446) target = $region60
      $region59: #{seq2seq_forward.2} parent=39 // pred_region
        _
      $region60: #{seq2seq_forward.2} parent=39 // pred_fallthru
        _
    $region40: #{seq2seq_forward.2} parent=5 // pred_fallthru
      _
    %p449 = scmp.le.s32.totalorder 2, %s13
    // Predicated region
    $region61: #{seq2seq_forward.2} parent=5 // pred_check
      %p450 = pneg %p449
    $region62: #{seq2seq_forward.2} parent=5 // pred_check_branch
      %452 = sbr.rel (%p450) target = $region64
    $region63: #{seq2seq_forward.2} parent=5 // pred_region
      %s453 = ssub.s32 %s13, 2
    $region64: #{seq2seq_forward.2} parent=5 // pred_fallthru
      _
  $region6: #{seq2seq_forward.2} parent=0 // loop_footer
    %s17 = sadd.s32 1, %s13
  $region7: #{seq2seq_forward.2} parent=0 // loop_footer_branch
    %12 = sbr.rel target = $region3
  $region8: #{seq2seq_forward.2} parent=0 // loop_exit
    _

// kernel: seq2seq_forward.3
$region0: #{seq2seq_forward.3}
  #allocation0 [shape = 'u32[]', space=smem, size = 0x4, offset = 0x4, fixed_abs, tag = 'smem constant byte address 0x4 - core index']
  #allocation1 [shape = 'u32[72,128]{1,0:T(1,128)}', space=vmem, size = 0x9000, scoped, tag = 'internal scratch']
  #allocation2 [shape = 'f32[2,8,32]{2,1,0:T(8,128)}', space=vmem, size = 0x2000, scoped, tag = 'scratch operand']
  #allocation3 [shape = 'f32[2,8,32]{2,1,0:T(8,128)}', space=vmem, size = 0x2000, scoped, tag = 'scratch operand']
  #allocation4 [shape = 'f32[8,128]{1,0:T(8,128)}', space=vmem, size = 0x1000, scoped, tag = 'scratch operand']
  #allocation5 [shape = 's32[1]{0}', space=sflag, size = 0x4, scoped, tag = 'scoped memory for seq2seq_forward.3']
  #allocation6 [shape = 'u8[512]{0}', space=smem, size = 0x200, scoped, tag = 'prefetched SMEM operand 0']
  %s0 = inlined_call_operand.vmem [shape: s32[7], index: 0, kind: input, shape index: {}]
  %s1 = inlined_call_operand.vmem [shape: f32[7,8,128], index: 1, kind: input, shape index: {}]
  %s2 = inlined_call_operand.vmem [shape: f32[128,32], index: 2, kind: input, shape index: {}]
  %s3 = inlined_call_operand.vmem [shape: f32[32,128], index: 3, kind: input, shape index: {}]
  %s4 = inlined_call_operand.vmem [shape: f32[32,128], index: 4, kind: input, shape index: {}]
  %s5 = inlined_call_operand.vmem [shape: f32[1,128], index: 5, kind: input, shape index: {}]
  %s6 = inlined_call_operand.vmem [shape: f32[32,128], index: 6, kind: input, shape index: {}]
  %s7 = inlined_call_operand.vmem [shape: f32[32,128], index: 7, kind: input, shape index: {}]
  %s8 = inlined_call_operand.vmem [shape: f32[1,128], index: 8, kind: input, shape index: {}]
  %s9 = inlined_call_operand.vmem [shape: f32[32,128], index: 9, kind: input, shape index: {}]
  %s10 = inlined_call_operand.vmem [shape: f32[1,128], index: 10, kind: input, shape index: {}]
  %s11 = inlined_call_operand.vmem [shape: f32[2,8,32], index: 11, kind: input, shape index: {}]
  %s12 = inlined_call_operand.vmem [shape: f32[2,8,32], index: 12, kind: input, shape index: {}]
  %s13 = inlined_call_operand.vmem [shape: f32[7,8,128], index: 13, kind: output, shape index: {}]
  %s14 = sld [smem:[#allocation0]]
  $region85: #{seq2seq_forward.3} parent=0
    _
  %s16 = ssub.s32 1, %s14
  %s17 = scalar_select 0, %s16, %s14
  %s19 = sshll.u32 %s0, 4
  %s20 = int_to_ptr.vmem [resolvable:$true] %s19
  %22 = dma.vmem_to_smem %s20, 16, [#allocation6], [#allocation5]
  %24 = dma.done [#allocation5], 16
  %25 = sfence
  loop: start=0, step=1, limit=9
  $region2: #{seq2seq_forward.3} parent=0 // loop_pre_header
    _
  $region3: #{seq2seq_forward.3} parent=0 // loop_header
    %s27 = sphi 0, %s31
    %p28 = scmp.ge.s32.totalorder %s27, 9
    %s37 = sphi 0, %s39
    %s40 = sphi 0, %s37
    %s41 = sphi 0, %s40
    %s57 = sphi 0, %s41
    %s61 = sphi 0, %s61
    %s63 = sphi 0, %s61
    %s64 = sphi 0, %s63
    %s78 = sphi 0, %s64
    %s82 = sphi 0, %s82
    %s84 = sphi 0, %s82
    %s85 = sphi 0, %s84
    %s99 = sphi 0, %s85
    %s103 = sphi 0, %s103
    %s105 = sphi 0, %s103
    %s106 = sphi 0, %s105
    %s120 = sphi 0, %s106
    %s124 = sphi 0, %s124
    %s126 = sphi 0, %s124
    %s127 = sphi 0, %s126
    %s141 = sphi 0, %s127
    %s145 = sphi 0, %s145
    %s147 = sphi 0, %s145
    %s148 = sphi 0, %s147
    %s162 = sphi 0, %s148
    %s166 = sphi 0, %s166
    %s168 = sphi 0, %s166
    %s169 = sphi 0, %s168
    %s183 = sphi 0, %s169
    %s187 = sphi 0, %s187
    %s189 = sphi 0, %s187
    %s190 = sphi 0, %s189
    %s204 = sphi 0, %s190
    %s208 = sphi 0, %s208
    %s210 = sphi 0, %s208
    %s211 = sphi 0, %s210
    %s225 = sphi 0, %s211
    %s229 = sphi 0, %s229
    %s231 = sphi 0, %s229
    %s232 = sphi 0, %s231
    %s246 = sphi 0, %s232
    %s250 = sphi 0, %s250
    %s252 = sphi 0, %s250
    %s253 = sphi 0, %s252
    %s267 = sphi 0, %s253
    %s271 = sphi 0, %s271
    %s273 = sphi 0, %s271
    %s274 = sphi 0, %s273
    %s288 = sphi 0, %s274
    %s294 = sphi 0, %s296
    %s297 = sphi 0, %s294
    %s298 = sphi 0, %s297
    %s314 = sphi 0, %s298
  $region4: #{seq2seq_forward.3} parent=0 // loop_header_branch
    %30 = sbr.rel (%p28) target = $region8
  $region5: #{seq2seq_forward.3} parent=0 // loop_body
    %s32 = ssub.s32 %s27, 1
    %s33 = ssub.s32 %s27, 2
    %s34 = sadd.s32 %s27, 1
    %s35 = ssub.s32 %s27, %s34
    %p36 = scmp.eq.s32.totalorder %s35, 0
    %s38 = sadd.s32 %s37, 1
    %s39 = scalar_select %p36, %s37, %s38
    %p42 = pneg %p36
    %p43 = scmp.eq.s32.totalorder %s27, 6
    %p44 = por %p42, %p43
    %p45 = scmp.ne.s32.totalorder %s37, %s40
    %p46 = scmp.eq.s32.totalorder %s27, 0
    %p47 = por %p45, %p46
    %p48 = scmp.ne.s32.totalorder %s37, %s40
    %p49 = scmp.eq.s32.totalorder %s32, 6
    %p50 = por %p48, %p49
    %p51 = scmp.ne.s32.totalorder %s40, %s41
    %p52 = scmp.eq.s32.totalorder %s32, 0
    %p53 = por %p51, %p52
    %p54 = scmp.ne.s32.totalorder %s40, %s41
    %p55 = scmp.eq.s32.totalorder %s33, 6
    %p56 = por %p54, %p55
    %p58 = scmp.ne.s32.totalorder %s41, %s57
    %p59 = scmp.eq.s32.totalorder %s33, 0
    %p60 = por %p58, %p59
    %s62 = sadd.s32 %s61, 1
    %p65 = scmp.eq.s32.totalorder %s27, 6
    %p66 = scmp.ne.s32.totalorder %s61, %s63
    %p67 = scmp.eq.s32.totalorder %s27, 0
    %p68 = por %p66, %p67
    %p69 = scmp.ne.s32.totalorder %s61, %s63
    %p70 = scmp.eq.s32.totalorder %s32, 6
    %p71 = por %p69, %p70
    %p72 = scmp.ne.s32.totalorder %s63, %s64
    %p73 = scmp.eq.s32.totalorder %s32, 0
    %p74 = por %p72, %p73
    %p75 = scmp.ne.s32.totalorder %s63, %s64
    %p76 = scmp.eq.s32.totalorder %s33, 6
    %p77 = por %p75, %p76
    %p79 = scmp.ne.s32.totalorder %s64, %s78
    %p80 = scmp.eq.s32.totalorder %s33, 0
    %p81 = por %p79, %p80
    %s83 = sadd.s32 %s82, 1
    %p86 = scmp.eq.s32.totalorder %s27, 6
    %p87 = scmp.ne.s32.totalorder %s82, %s84
    %p88 = scmp.eq.s32.totalorder %s27, 0
    %p89 = por %p87, %p88
    %p90 = scmp.ne.s32.totalorder %s82, %s84
    %p91 = scmp.eq.s32.totalorder %s32, 6
    %p92 = por %p90, %p91
    %p93 = scmp.ne.s32.totalorder %s84, %s85
    %p94 = scmp.eq.s32.totalorder %s32, 0
    %p95 = por %p93, %p94
    %p96 = scmp.ne.s32.totalorder %s84, %s85
    %p97 = scmp.eq.s32.totalorder %s33, 6
    %p98 = por %p96, %p97
    %p100 = scmp.ne.s32.totalorder %s85, %s99
    %p101 = scmp.eq.s32.totalorder %s33, 0
    %p102 = por %p100, %p101
    %s104 = sadd.s32 %s103, 1
    %p107 = scmp.eq.s32.totalorder %s27, 6
    %p108 = scmp.ne.s32.totalorder %s103, %s105
    %p109 = scmp.eq.s32.totalorder %s27, 0
    %p110 = por %p108, %p109
    %p111 = scmp.ne.s32.totalorder %s103, %s105
    %p112 = scmp.eq.s32.totalorder %s32, 6
    %p113 = por %p111, %p112
    %p114 = scmp.ne.s32.totalorder %s105, %s106
    %p115 = scmp.eq.s32.totalorder %s32, 0
    %p116 = por %p114, %p115
    %p117 = scmp.ne.s32.totalorder %s105, %s106
    %p118 = scmp.eq.s32.totalorder %s33, 6
    %p119 = por %p117, %p118
    %p121 = scmp.ne.s32.totalorder %s106, %s120
    %p122 = scmp.eq.s32.totalorder %s33, 0
    %p123 = por %p121, %p122
    %s125 = sadd.s32 %s124, 1
    %p128 = scmp.eq.s32.totalorder %s27, 6
    %p129 = scmp.ne.s32.totalorder %s124, %s126
    %p130 = scmp.eq.s32.totalorder %s27, 0
    %p131 = por %p129, %p130
    %p132 = scmp.ne.s32.totalorder %s124, %s126
    %p133 = scmp.eq.s32.totalorder %s32, 6
    %p134 = por %p132, %p133
    %p135 = scmp.ne.s32.totalorder %s126, %s127
    %p136 = scmp.eq.s32.totalorder %s32, 0
    %p137 = por %p135, %p136
    %p138 = scmp.ne.s32.totalorder %s126, %s127
    %p139 = scmp.eq.s32.totalorder %s33, 6
    %p140 = por %p138, %p139
    %p142 = scmp.ne.s32.totalorder %s127, %s141
    %p143 = scmp.eq.s32.totalorder %s33, 0
    %p144 = por %p142, %p143
    %s146 = sadd.s32 %s145, 1
    %p149 = scmp.eq.s32.totalorder %s27, 6
    %p150 = scmp.ne.s32.totalorder %s145, %s147
    %p151 = scmp.eq.s32.totalorder %s27, 0
    %p152 = por %p150, %p151
    %p153 = scmp.ne.s32.totalorder %s145, %s147
    %p154 = scmp.eq.s32.totalorder %s32, 6
    %p155 = por %p153, %p154
    %p156 = scmp.ne.s32.totalorder %s147, %s148
    %p157 = scmp.eq.s32.totalorder %s32, 0
    %p158 = por %p156, %p157
    %p159 = scmp.ne.s32.totalorder %s147, %s148
    %p160 = scmp.eq.s32.totalorder %s33, 6
    %p161 = por %p159, %p160
    %p163 = scmp.ne.s32.totalorder %s148, %s162
    %p164 = scmp.eq.s32.totalorder %s33, 0
    %p165 = por %p163, %p164
    %s167 = sadd.s32 %s166, 1
    %p170 = scmp.eq.s32.totalorder %s27, 6
    %p171 = scmp.ne.s32.totalorder %s166, %s168
    %p172 = scmp.eq.s32.totalorder %s27, 0
    %p173 = por %p171, %p172
    %p174 = scmp.ne.s32.totalorder %s166, %s168
    %p175 = scmp.eq.s32.totalorder %s32, 6
    %p176 = por %p174, %p175
    %p177 = scmp.ne.s32.totalorder %s168, %s169
    %p178 = scmp.eq.s32.totalorder %s32, 0
    %p179 = por %p177, %p178
    %p180 = scmp.ne.s32.totalorder %s168, %s169
    %p181 = scmp.eq.s32.totalorder %s33, 6
    %p182 = por %p180, %p181
    %p184 = scmp.ne.s32.totalorder %s169, %s183
    %p185 = scmp.eq.s32.totalorder %s33, 0
    %p186 = por %p184, %p185
    %s188 = sadd.s32 %s187, 1
    %p191 = scmp.eq.s32.totalorder %s27, 6
    %p192 = scmp.ne.s32.totalorder %s187, %s189
    %p193 = scmp.eq.s32.totalorder %s27, 0
    %p194 = por %p192, %p193
    %p195 = scmp.ne.s32.totalorder %s187, %s189
    %p196 = scmp.eq.s32.totalorder %s32, 6
    %p197 = por %p195, %p196
    %p198 = scmp.ne.s32.totalorder %s189, %s190
    %p199 = scmp.eq.s32.totalorder %s32, 0
    %p200 = por %p198, %p199
    %p201 = scmp.ne.s32.totalorder %s189, %s190
    %p202 = scmp.eq.s32.totalorder %s33, 6
    %p203 = por %p201, %p202
    %p205 = scmp.ne.s32.totalorder %s190, %s204
    %p206 = scmp.eq.s32.totalorder %s33, 0
    %p207 = por %p205, %p206
    %s209 = sadd.s32 %s208, 1
    %p212 = scmp.eq.s32.totalorder %s27, 6
    %p213 = scmp.ne.s32.totalorder %s208, %s210
    %p214 = scmp.eq.s32.totalorder %s27, 0
    %p215 = por %p213, %p214
    %p216 = scmp.ne.s32.totalorder %s208, %s210
    %p217 = scmp.eq.s32.totalorder %s32, 6
    %p218 = por %p216, %p217
    %p219 = scmp.ne.s32.totalorder %s210, %s211
    %p220 = scmp.eq.s32.totalorder %s32, 0
    %p221 = por %p219, %p220
    %p222 = scmp.ne.s32.totalorder %s210, %s211
    %p223 = scmp.eq.s32.totalorder %s33, 6
    %p224 = por %p222, %p223
    %p226 = scmp.ne.s32.totalorder %s211, %s225
    %p227 = scmp.eq.s32.totalorder %s33, 0
    %p228 = por %p226, %p227
    %s230 = sadd.s32 %s229, 1
    %p233 = scmp.eq.s32.totalorder %s27, 6
    %p234 = scmp.ne.s32.totalorder %s229, %s231
    %p235 = scmp.eq.s32.totalorder %s27, 0
    %p236 = por %p234, %p235
    %p237 = scmp.ne.s32.totalorder %s229, %s231
    %p238 = scmp.eq.s32.totalorder %s32, 6
    %p239 = por %p237, %p238
    %p240 = scmp.ne.s32.totalorder %s231, %s232
    %p241 = scmp.eq.s32.totalorder %s32, 0
    %p242 = por %p240, %p241
    %p243 = scmp.ne.s32.totalorder %s231, %s232
    %p244 = scmp.eq.s32.totalorder %s33, 6
    %p245 = por %p243, %p244
    %p247 = scmp.ne.s32.totalorder %s232, %s246
    %p248 = scmp.eq.s32.totalorder %s33, 0
    %p249 = por %p247, %p248
    %s251 = sadd.s32 %s250, 1
    %p254 = scmp.eq.s32.totalorder %s27, 6
    %p255 = scmp.ne.s32.totalorder %s250, %s252
    %p256 = scmp.eq.s32.totalorder %s27, 0
    %p257 = por %p255, %p256
    %p258 = scmp.ne.s32.totalorder %s250, %s252
    %p259 = scmp.eq.s32.totalorder %s32, 6
    %p260 = por %p258, %p259
    %p261 = scmp.ne.s32.totalorder %s252, %s253
    %p262 = scmp.eq.s32.totalorder %s32, 0
    %p263 = por %p261, %p262
    %p264 = scmp.ne.s32.totalorder %s252, %s253
    %p265 = scmp.eq.s32.totalorder %s33, 6
    %p266 = por %p264, %p265
    %p268 = scmp.ne.s32.totalorder %s253, %s267
    %p269 = scmp.eq.s32.totalorder %s33, 0
    %p270 = por %p268, %p269
    %s272 = sadd.s32 %s271, 1
    %p275 = scmp.eq.s32.totalorder %s27, 6
    %p276 = scmp.ne.s32.totalorder %s271, %s273
    %p277 = scmp.eq.s32.totalorder %s27, 0
    %p278 = por %p276, %p277
    %p279 = scmp.ne.s32.totalorder %s271, %s273
    %p280 = scmp.eq.s32.totalorder %s32, 6
    %p281 = por %p279, %p280
    %p282 = scmp.ne.s32.totalorder %s273, %s274
    %p283 = scmp.eq.s32.totalorder %s32, 0
    %p284 = por %p282, %p283
    %p285 = scmp.ne.s32.totalorder %s273, %s274
    %p286 = scmp.eq.s32.totalorder %s33, 6
    %p287 = por %p285, %p286
    %p289 = scmp.ne.s32.totalorder %s274, %s288
    %p290 = scmp.eq.s32.totalorder %s33, 0
    %p291 = por %p289, %p290
    %s292 = ssub.s32 %s27, %s34
    %p293 = scmp.eq.s32.totalorder %s292, 0
    %s295 = sadd.s32 %s294, 1
    %s296 = scalar_select %p293, %s294, %s295
    %p299 = pneg %p293
    %p300 = scmp.eq.s32.totalorder %s27, 6
    %p301 = por %p299, %p300
    %p302 = scmp.ne.s32.totalorder %s294, %s297
    %p303 = scmp.eq.s32.totalorder %s27, 0
    %p304 = por %p302, %p303
    %p305 = scmp.ne.s32.totalorder %s294, %s297
    %p306 = scmp.eq.s32.totalorder %s32, 6
    %p307 = por %p305, %p306
    %p308 = scmp.ne.s32.totalorder %s297, %s298
    %p309 = scmp.eq.s32.totalorder %s32, 0
    %p310 = por %p308, %p309
    %p311 = scmp.ne.s32.totalorder %s297, %s298
    %p312 = scmp.eq.s32.totalorder %s33, 6
    %p313 = por %p311, %p312
    %p315 = scmp.ne.s32.totalorder %s298, %s314
    %p316 = scmp.eq.s32.totalorder %s33, 0
    %p317 = por %p315, %p316
    %p318 = scmp.le.s32.totalorder 1, %s27
    %p319 = scmp.lt.s32.totalorder %s27, 8
    %p320 = pnand %p318, %p319
    %p321 = pneg %p320
    // Predicated region
    $region9: #{seq2seq_forward.3} parent=5 // pred_check
      _
    $region10: #{seq2seq_forward.3} parent=5 // pred_check_branch
      %323 = sbr.rel (%p320) target = $region12
    $region11: #{seq2seq_forward.3} parent=5 // pred_region
      %s324 = ssub.s32 %s27, 1
      // Predicated region
      $region13: #{seq2seq_forward.3} parent=11 // pred_check
        %p325 = pneg %p74
      $region14: #{seq2seq_forward.3} parent=11 // pred_check_branch
        %327 = sbr.rel (%p325) target = $region16
      $region15: #{seq2seq_forward.3} parent=11 // pred_region
        _
      $region16: #{seq2seq_forward.3} parent=11 // pred_fallthru
        _
      // Predicated region
      $region17: #{seq2seq_forward.3} parent=11 // pred_check
        %p328 = pneg %p95
      $region18: #{seq2seq_forward.3} parent=11 // pred_check_branch
        %330 = sbr.rel (%p328) target = $region20
      $region19: #{seq2seq_forward.3} parent=11 // pred_region
        _
      $region20: #{seq2seq_forward.3} parent=11 // pred_fallthru
        _
      // Predicated region
      $region21: #{seq2seq_forward.3} parent=11 // pred_check
        %p331 = pneg %p116
      $region22: #{seq2seq_forward.3} parent=11 // pred_check_branch
        %333 = sbr.rel (%p331) target = $region24
      $region23: #{seq2seq_forward.3} parent=11 // pred_region
        _
      $region24: #{seq2seq_forward.3} parent=11 // pred_fallthru
        _
      // Predicated region
      $region25: #{seq2seq_forward.3} parent=11 // pred_check
        %p334 = pneg %p137
      $region26: #{seq2seq_forward.3} parent=11 // pred_check_branch
        %336 = sbr.rel (%p334) target = $region28
      $region27: #{seq2seq_forward.3} parent=11 // pred_region
        _
      $region28: #{seq2seq_forward.3} parent=11 // pred_fallthru
        _
      // Predicated region
      $region29: #{seq2seq_forward.3} parent=11 // pred_check
        %p337 = pneg %p158
      $region30: #{seq2seq_forward.3} parent=11 // pred_check_branch
        %339 = sbr.rel (%p337) target = $region32
      $region31: #{seq2seq_forward.3} parent=11 // pred_region
        _
      $region32: #{seq2seq_forward.3} parent=11 // pred_fallthru
        _
      // Predicated region
      $region33: #{seq2seq_forward.3} parent=11 // pred_check
        %p340 = pneg %p179
      $region34: #{seq2seq_forward.3} parent=11 // pred_check_branch
        %342 = sbr.rel (%p340) target = $region36
      $region35: #{seq2seq_forward.3} parent=11 // pred_region
        _
      $region36: #{seq2seq_forward.3} parent=11 // pred_fallthru
        _
      // Predicated region
      $region37: #{seq2seq_forward.3} parent=11 // pred_check
        %p343 = pneg %p200
      $region38: #{seq2seq_forward.3} parent=11 // pred_check_branch
        %345 = sbr.rel (%p343) target = $region40
      $region39: #{seq2seq_forward.3} parent=11 // pred_region
        _
      $region40: #{seq2seq_forward.3} parent=11 // pred_fallthru
        _
      // Predicated region
      $region41: #{seq2seq_forward.3} parent=11 // pred_check
        %p346 = pneg %p221
      $region42: #{seq2seq_forward.3} parent=11 // pred_check_branch
        %348 = sbr.rel (%p346) target = $region44
      $region43: #{seq2seq_forward.3} parent=11 // pred_region
        _
      $region44: #{seq2seq_forward.3} parent=11 // pred_fallthru
        _
      // Predicated region
      $region45: #{seq2seq_forward.3} parent=11 // pred_check
        %p349 = pneg %p242
      $region46: #{seq2seq_forward.3} parent=11 // pred_check_branch
        %351 = sbr.rel (%p349) target = $region48
      $region47: #{seq2seq_forward.3} parent=11 // pred_region
        _
      $region48: #{seq2seq_forward.3} parent=11 // pred_fallthru
        _
      // Predicated region
      $region49: #{seq2seq_forward.3} parent=11 // pred_check
        %p352 = pneg %p263
      $region50: #{seq2seq_forward.3} parent=11 // pred_check_branch
        %354 = sbr.rel (%p352) target = $region52
      $region51: #{seq2seq_forward.3} parent=11 // pred_region
        _
      $region52: #{seq2seq_forward.3} parent=11 // pred_fallthru
        _
      // Predicated region
      $region53: #{seq2seq_forward.3} parent=11 // pred_check
        %p355 = pneg %p284
      $region54: #{seq2seq_forward.3} parent=11 // pred_check_branch
        %357 = sbr.rel (%p355) target = $region56
      $region55: #{seq2seq_forward.3} parent=11 // pred_region
        _
      $region56: #{seq2seq_forward.3} parent=11 // pred_fallthru
        _
    $region12: #{seq2seq_forward.3} parent=5 // pred_fallthru
      _
    %p358 = scmp.lt.s32.totalorder %s27, 7
    // Predicated region
    $region57: #{seq2seq_forward.3} parent=5 // pred_check
      %p359 = pneg %p358
    $region58: #{seq2seq_forward.3} parent=5 // pred_check_branch
      %361 = sbr.rel (%p359) target = $region60
    $region59: #{seq2seq_forward.3} parent=5 // pred_region
      // Predicated region
      $region61: #{seq2seq_forward.3} parent=59 // pred_check
        %p362 = pneg %p47
      $region62: #{seq2seq_forward.3} parent=59 // pred_check_branch
        %364 = sbr.rel (%p362) target = $region64
      $region63: #{seq2seq_forward.3} parent=59 // pred_region
        %p365 = scmp.lt.s32.totalorder %s27, 6
        %s366 = scalar_select %p365, %s27, 6
        %s367 = smul.addr %s366, 8
        %s368 = scalar_lea.vmem %s1, %s367
      $region64: #{seq2seq_forward.3} parent=59 // pred_fallthru
        _
    $region60: #{seq2seq_forward.3} parent=5 // pred_fallthru
      _
    %p369 = scmp.le.s32.totalorder 1, %s27
    %p370 = scmp.lt.s32.totalorder %s27, 8
    %p371 = pnand %p369, %p370
    %p372 = pneg %p371
    // Predicated region
    $region65: #{seq2seq_forward.3} parent=5 // pred_check
      _
    $region66: #{seq2seq_forward.3} parent=5 // pred_check_branch
      %374 = sbr.rel (%p371) target = $region68
    $region67: #{seq2seq_forward.3} parent=5 // pred_region
      %s375 = ssub.s32 %s27, 1
      %p376 = scmp.lt.s32.totalorder %s32, 6
      %s377 = scalar_select %p376, %s32, 6
      %s378 = smul.addr %s377, 8
      %s379 = scalar_lea.vmem %s1, %s378
      %p380 = pneg %p53
      %p381 = pneg %p50
      %p382 = pneg %p74
      %p383 = pneg %p71
      %p384 = pneg %p95
      %p385 = pneg %p92
      %p386 = pneg %p116
      %p387 = pneg %p113
      %p388 = pneg %p137
      %p389 = pneg %p134
      %p390 = pneg %p158
      %p391 = pneg %p155
      %p392 = pneg %p179
      %p393 = pneg %p176
      %p394 = pneg %p200
      %p395 = pneg %p197
      %p396 = pneg %p221
      %p397 = pneg %p218
      %p398 = pneg %p242
      %p399 = pneg %p239
      %p400 = pneg %p263
      %p401 = pneg %p260
      %p402 = pneg %p284
      %p403 = pneg %p281
      %p404 = pneg %p310
      %p405 = pneg %p307
      %p406 = scmp.lt.s32.totalorder %s32, 6
      %s407 = scalar_select %p406, %s32, 6
      %s408 = smul.addr %s407, 8
      %s409 = scalar_lea.vmem %s13, %s408
      %p410 = scmp.lt.s32.totalorder %s32, 6
      %s411 = scalar_select %p410, %s32, 6
      %s412 = smul.addr %s411, 8
      %s413 = scalar_lea.vmem %s1, %s412
      %p414 = scmp.lt.s32.totalorder %s32, 6
      %s415 = scalar_select %p414, %s32, 6
      %s416 = smul.addr %s415, 8
      %s417 = scalar_lea.vmem %s13, %s416
      %p418 = scmp.eq.s32.totalorder %s32, 0
      // Predicated region
      $region69: #{seq2seq_forward.3} parent=67 // pred_check
        %p419 = pneg %p418
      $region70: #{seq2seq_forward.3} parent=67 // pred_check_branch
        %421 = sbr.rel (%p419) target = $region72
      $region71: #{seq2seq_forward.3} parent=67 // pred_region
        %v422 = vld [vmem:[%s11] sm:$0xff]
        %v423 = vld [vmem:[%s11 + $0x8] sm:$0xff]
        %vm424 = vcmask 261120
        %425 = vst.msk [vmem:[#allocation2] sm:$0xff] %vm424, %v422
        %426 = vst.msk [vmem:[#allocation2 + $0x8] sm:$0xff] %vm424, %v423
        %v427 = vld [vmem:[%s12] sm:$0xff]
        %v428 = vld [vmem:[%s12 + $0x8] sm:$0xff]
        %429 = vst.msk [vmem:[#allocation3] sm:$0xff] %vm424, %v427
        %430 = vst.msk [vmem:[#allocation3 + $0x8] sm:$0xff] %vm424, %v428
        %431 = vst [vmem:[#allocation4] sm:$0xff] 0.0
      $region72: #{seq2seq_forward.3} parent=67 // pred_fallthru
        _
      %s432 = sld [smem:[#allocation6 + %s32]]
      %p433 = scmp.ne.s32.totalorder %s432, 0
      %s434 = scalar_select %p433, 1, 0
      %s435 = scvt.s32.f32 %s434
      %v436 = vld [vmem:[%s413] sm:$0xff]
      %v437 = vstv %s435
      %v438 = vmul.f32 %v437, %v436
      %s439 = ssub.f32 1.0, %s435
      %v440 = vld [vmem:[#allocation4] sm:$0xff]
      %v441 = vstv %s439
      %v442 = vmul.f32 %v441, %v440
      %v443 = vadd.f32 %v438, %v442
      %v444 = vld [vmem:[%s2] sm:$0xff]
      %v445 = vld [vmem:[%s2 + $0x8] sm:$0xff]
      %v446 = vld [vmem:[%s2 + $0x10] sm:$0xff]
      %v447 = vld [vmem:[%s2 + $0x18] sm:$0xff]
      %v448 = vld [vmem:[%s2 + $0x20] sm:$0xff]
      %v449 = vld [vmem:[%s2 + $0x28] sm:$0xff]
      %v450 = vld [vmem:[%s2 + $0x30] sm:$0xff]
      %v451 = vld [vmem:[%s2 + $0x38] sm:$0xff]
      %v452 = vld [vmem:[%s2 + $0x40] sm:$0xff]
      %v453 = vld [vmem:[%s2 + $0x48] sm:$0xff]
      %v454 = vld [vmem:[%s2 + $0x50] sm:$0xff]
      %v455 = vld [vmem:[%s2 + $0x58] sm:$0xff]
      %v456 = vld [vmem:[%s2 + $0x60] sm:$0xff]
      %v457 = vld [vmem:[%s2 + $0x68] sm:$0xff]
      %v458 = vld [vmem:[%s2 + $0x70] sm:$0xff]
      %v459 = vld [vmem:[%s2 + $0x78] sm:$0xff]
      %460 = vmatpush.msra.mxu0 %v459
      %461 = vmatpush.msra.mxu0 %v458
      %462 = vmatpush.msra.mxu0 %v457
      %463 = vmatpush.msra.mxu0 %v456
      %464 = vmatpush.msra.mxu0 %v455
      %465 = vmatpush.msra.mxu0 %v454
      %466 = vmatpush.msra.mxu0 %v453
      %467 = vmatpush.msra.mxu0 %v452
      %468 = vmatpush.msra.mxu0 %v451
      %469 = vmatpush.msra.mxu0 %v450
      %470 = vmatpush.msra.mxu0 %v449
      %471 = vmatpush.msra.mxu0 %v448
      %472 = vmatpush.msra.mxu0 %v447
      %473 = vmatpush.msra.mxu0 %v446
      %474 = vmatpush.msra.mxu0 %v445
      %475 = vmatpush.msra.mxu0 %v444
      %476 = vmatmul.f32.gmra.mxu0 %v443
      %v477 = vpop.f32.mrf.mxu0
      %v478 = vadd.f32 0.0, %v477
      %479 = vdwg.mxu0
      %v480 = vld [vmem:[%s3] sm:$0xff]
      %v481 = vld [vmem:[%s3 + $0x8] sm:$0xff]
      %v482 = vld [vmem:[%s3 + $0x10] sm:$0xff]
      %v483 = vld [vmem:[%s3 + $0x18] sm:$0xff]
      %v484 = vld [vmem:[#allocation2] sm:$0xff]
      %v485 = vld [vmem:[%s4] sm:$0xff]
      %v486 = vld [vmem:[%s4 + $0x8] sm:$0xff]
      %v487 = vld [vmem:[%s4 + $0x10] sm:$0xff]
      %v488 = vld [vmem:[%s4 + $0x18] sm:$0xff]
      %vm489 = vcmask 261120
      %v491 = vsel %vm489, %v484, 0
      %493 = vmatpush.msra.mxu0 0.0
      %494 = vmatpush.msra.mxu0 0.0
      %495 = vmatpush.msra.mxu0 0.0
      %496 = vmatpush.msra.mxu0 0.0
      %497 = vmatpush.msra.mxu0 0.0
      %498 = vmatpush.msra.mxu0 0.0
      %499 = vmatpush.msra.mxu0 0.0
      %500 = vmatpush.msra.mxu0 0.0
      %501 = vmatpush.msra.mxu0 0.0
      %502 = vmatpush.msra.mxu0 0.0
      %503 = vmatpush.msra.mxu0 0.0
      %504 = vmatpush.msra.mxu0 0.0
      %505 = vmatpush.msra.mxu0 %v488
      %506 = vmatpush.msra.mxu0 %v487
      %507 = vmatpush.msra.mxu0 %v486
      %508 = vmatpush.msra.mxu0 %v485
      %509 = vmatmul.f32.gmra.mxu0 %v491
      %v510 = vpop.f32.mrf.mxu0
      %v511 = vadd.f32 0.0, %v510
      %512 = vdwg.mxu0
      %v514 = vsel %vm489, %v478, 0
      %516 = vmatpush.msra.mxu0 0.0
      %517 = vmatpush.msra.mxu0 0.0
      %518 = vmatpush.msra.mxu0 0.0
      %519 = vmatpush.msra.mxu0 0.0
      %520 = vmatpush.msra.mxu0 0.0
      %521 = vmatpush.msra.mxu0 0.0
      %522 = vmatpush.msra.mxu0 0.0
      %523 = vmatpush.msra.mxu0 0.0
      %524 = vmatpush.msra.mxu0 0.0
      %525 = vmatpush.msra.mxu0 0.0
      %526 = vmatpush.msra.mxu0 0.0
      %527 = vmatpush.msra.mxu0 0.0
      %528 = vmatpush.msra.mxu0 %v483
      %529 = vmatpush.msra.mxu0 %v482
      %530 = vmatpush.msra.mxu0 %v481
      %531 = vmatpush.msra.mxu0 %v480
      %532 = vmatmul.f32.gmra.mxu0 %v514
      %v533 = vpop.f32.mrf.mxu0
      %v534 = vadd.f32 %v511, %v533
      %535 = vdwg.mxu0
      %v536 = vld [vmem:[%s5] sm:$0x1]
      %v538 = vperm.slane %v536, 0
      %v540 = vadd.f32 %v534, %v538
      %v541 = vld [vmem:[#allocation3] sm:$0xff]
      %v542 = vxor.u32 %v540, 2147483648
      %v543 = vmul.f32 %v542, 1.442695
      %v544 = vpow.pop %v543
      %v545 = vadd.f32 %v544, 1.0
      %v546 = vrcp.pop %v545
      %v547 = vmul.f32 %v545, %v546
      %v548 = vsub.f32 1.0, %v547
      %v549 = vmul.f32 %v546, %v548
      %v550 = vadd.f32 %v546, %v549
      %vm551 = vweird.f32 %v545
      %vm552 = vweird.f32 %v546
      %vm553 = vmor %vm551, %vm552
      %v554 = vsel %vm553, %v546, %v550
      %v555 = vand.u32 2147483647, %v545
      %vm556 = vcmp.eq.f32.partialorder %v555, 8.507059e+37
      %v557 = vand.u32 %v545, 2147483648
      %v558 = vor.u32 1.1754944e-38, %v557
      %v559 = vsel %vm556, %v558, %v554
      %v560 = vmul.f32 1.0, %v559
      %v561 = vtanh.pop %v540
      %563 = vrot.lane.b32.xlu0 %v541, 32
      %v564 = vpop.permute.xlu0 %563
      %v566 = vmul.f32 %v560, %v564
      %568 = vrot.lane.b32.xlu0 %v561, 64
      %v569 = vpop.permute.xlu0 %568
      %v571 = vmul.f32 %v560, %v569
      %573 = vrot.lane.b32.xlu0 %v571, 32
      %v574 = vpop.permute.xlu0 %573
      %v576 = vadd.f32 %v566, %v574
      %v577 = vtanh.pop %v576
      %579 = vrot.lane.b32.xlu0 %v577, 64
      %v580 = vpop.permute.xlu0 %579
      %v582 = vmul.f32 %v560, %v580
      %584 = vrot.lane.b32.xlu0 %v582, 32
      %v585 = vpop.permute.xlu0 %584
      %587 = vst.msk [vmem:[#allocation2] sm:$0xff] %vm489, %v585
      %589 = vrot.lane.b32.xlu0 %v576, 96
      %v590 = vpop.permute.xlu0 %589
      %592 = vst.msk [vmem:[#allocation3] sm:$0xff] %vm489, %v590
      %v593 = vld [vmem:[%s6] sm:$0xff]
      %v594 = vld [vmem:[%s6 + $0x8] sm:$0xff]
      %v595 = vld [vmem:[%s6 + $0x10] sm:$0xff]
      %v596 = vld [vmem:[%s6 + $0x18] sm:$0xff]
      %s597 = scalar_lea.vmem [#allocation2], 8
      %v598 = vld [vmem:[%s597] sm:$0xff]
      %v599 = vld [vmem:[%s7] sm:$0xff]
      %v600 = vld [vmem:[%s7 + $0x8] sm:$0xff]
      %v601 = vld [vmem:[%s7 + $0x10] sm:$0xff]
      %v602 = vld [vmem:[%s7 + $0x18] sm:$0xff]
      %v604 = vsel %vm489, %v598, 0
      %606 = vmatpush.msra.mxu0 0.0
      %607 = vmatpush.msra.mxu0 0.0
      %608 = vmatpush.msra.mxu0 0.0
      %609 = vmatpush.msra.mxu0 0.0
      %610 = vmatpush.msra.mxu0 0.0
      %611 = vmatpush.msra.mxu0 0.0
      %612 = vmatpush.msra.mxu0 0.0
      %613 = vmatpush.msra.mxu0 0.0
      %614 = vmatpush.msra.mxu0 0.0
      %615 = vmatpush.msra.mxu0 0.0
      %616 = vmatpush.msra.mxu0 0.0
      %617 = vmatpush.msra.mxu0 0.0
      %618 = vmatpush.msra.mxu0 %v602
      %619 = vmatpush.msra.mxu0 %v601
      %620 = vmatpush.msra.mxu0 %v600
      %621 = vmatpush.msra.mxu0 %v599
      %622 = vmatmul.f32.gmra.mxu0 %v604
      %v623 = vpop.f32.mrf.mxu0
      %v624 = vadd.f32 0.0, %v623
      %625 = vdwg.mxu0
      %v626 = vsel %vm489, %v585, 0
      %628 = vmatpush.msra.mxu0 0.0
      %629 = vmatpush.msra.mxu0 0.0
      %630 = vmatpush.msra.mxu0 0.0
      %631 = vmatpush.msra.mxu0 0.0
      %632 = vmatpush.msra.mxu0 0.0
      %633 = vmatpush.msra.mxu0 0.0
      %634 = vmatpush.msra.mxu0 0.0
      %635 = vmatpush.msra.mxu0 0.0
      %636 = vmatpush.msra.mxu0 0.0
      %637 = vmatpush.msra.mxu0 0.0
      %638 = vmatpush.msra.mxu0 0.0
      %639 = vmatpush.msra.mxu0 0.0
      %640 = vmatpush.msra.mxu0 %v596
      %641 = vmatpush.msra.mxu0 %v595
      %642 = vmatpush.msra.mxu0 %v594
      %643 = vmatpush.msra.mxu0 %v593
      %644 = vmatmul.f32.gmra.mxu0 %v626
      %v645 = vpop.f32.mrf.mxu0
      %v646 = vadd.f32 %v624, %v645
      %647 = vdwg.mxu0
      %v648 = vld [vmem:[%s8] sm:$0x1]
      %v650 = vperm.slane %v648, 0
      %v652 = vadd.f32 %v646, %v650
      %s653 = scalar_lea.vmem [#allocation3], 8
      %v654 = vld [vmem:[%s653] sm:$0xff]
      %v655 = vxor.u32 %v652, 2147483648
      %v656 = vmul.f32 %v655, 1.442695
      %v657 = vpow.pop %v656
      %v658 = vadd.f32 %v657, 1.0
      %v659 = vrcp.pop %v658
      %v660 = vmul.f32 %v658, %v659
      %v661 = vsub.f32 1.0, %v660
      %v662 = vmul.f32 %v659, %v661
      %v663 = vadd.f32 %v659, %v662
      %vm664 = vweird.f32 %v658
      %vm665 = vweird.f32 %v659
      %vm666 = vmor %vm664, %vm665
      %v667 = vsel %vm666, %v659, %v663
      %v668 = vand.u32 2147483647, %v658
      %vm669 = vcmp.eq.f32.partialorder %v668, 8.507059e+37
      %v670 = vand.u32 %v658, 2147483648
      %v671 = vor.u32 1.1754944e-38, %v670
      %v672 = vsel %vm669, %v671, %v667
      %v673 = vmul.f32 1.0, %v672
      %v674 = vtanh.pop %v652
      %676 = vrot.lane.b32.xlu0 %v654, 32
      %v677 = vpop.permute.xlu0 %676
      %v679 = vmul.f32 %v673, %v677
      %681 = vrot.lane.b32.xlu0 %v674, 64
      %v682 = vpop.permute.xlu0 %681
      %v684 = vmul.f32 %v673, %v682
      %686 = vrot.lane.b32.xlu0 %v684, 32
      %v687 = vpop.permute.xlu0 %686
      %v689 = vadd.f32 %v679, %v687
      %v690 = vtanh.pop %v689
      %692 = vrot.lane.b32.xlu0 %v690, 64
      %v693 = vpop.permute.xlu0 %692
      %v695 = vmul.f32 %v673, %v693
      %697 = vrot.lane.b32.xlu0 %v695, 32
      %v698 = vpop.permute.xlu0 %697
      %700 = vst.msk [vmem:[%s597] sm:$0xff] %vm489, %v698
      %702 = vrot.lane.b32.xlu0 %v689, 96
      %v703 = vpop.permute.xlu0 %702
      %705 = vst.msk [vmem:[%s653] sm:$0xff] %vm489, %v703
      %v706 = vld [vmem:[%s9] sm:$0xff]
      %v707 = vld [vmem:[%s9 + $0x8] sm:$0xff]
      %v708 = vld [vmem:[%s9 + $0x10] sm:$0xff]
      %v709 = vld [vmem:[%s9 + $0x18] sm:$0xff]
      %v710 = vld [vmem:[%s10] sm:$0x1]
      %v712 = vperm.slane %v710, 0
      %v714 = vsel %vm489, %v698, 0
      %716 = vmatpush.msra.mxu0 0.0
      %717 = vmatpush.msra.mxu0 0.0
      %718 = vmatpush.msra.mxu0 0.0
      %719 = vmatpush.msra.mxu0 0.0
      %720 = vmatpush.msra.mxu0 0.0
      %721 = vmatpush.msra.mxu0 0.0
      %722 = vmatpush.msra.mxu0 0.0
      %723 = vmatpush.msra.mxu0 0.0
      %724 = vmatpush.msra.mxu0 0.0
      %725 = vmatpush.msra.mxu0 0.0
      %726 = vmatpush.msra.mxu0 0.0
      %727 = vmatpush.msra.mxu0 0.0
      %728 = vmatpush.msra.mxu0 %v709
      %729 = vmatpush.msra.mxu0 %v708
      %730 = vmatpush.msra.mxu0 %v707
      %731 = vmatpush.msra.mxu0 %v706
      %732 = vmatmul.f32.gmra.mxu0 %v714
      %v733 = vpop.f32.mrf.mxu0
      %v734 = vadd.f32 %v712, %v733
      %735 = vdwg.mxu0
      %736 = vst [vmem:[%s417] sm:$0xff] %v734
      %v737 = vlaneseq
      %v738 = vand.u32 %v737, 127
      %739 = vmax.xlane.f32.xlu0 %v734
      %v740 = vpop.xlane.xlu0 %739
      %vm741 = vcmp.eq.f32.partialorder %v734, %v740
      %v742 = vsel %vm741, %v738, 128
      %v743 = vand.u32 %v742, 65535
      %v744 = vshra.s32 %v742, 16
      %v745 = vcvt.s32.f32 %v743
      %v746 = vcvt.s32.f32 %v744
      %747 = vmin.xlane.f32.xlu0 %v746
      %v748 = vpop.xlane.xlu0 %747
      %vm749 = vcmp.eq.f32.partialorder %v746, %v748
      %v750 = vsel %vm749, %v745, inf
      %751 = vmin.xlane.f32.xlu0 %v750
      %v752 = vpop.xlane.xlu0 %751
      %v753 = vcvt.f32.s32 %v752
      %v754 = vcvt.f32.s32 %v748
      %v755 = vshll.u32 %v754, 16
      %v756 = vadd.s32 %v755, %v753
      %vm757 = vcmp.eq.s32.totalorder %v738, %v756
      %v758 = vsel %vm757, 1, 0
      %v759 = vcvt.s32.f32 %v758
      %760 = vst [vmem:[#allocation4] sm:$0xff] %v759
      %p761 = scmp.lt.s32.totalorder %s32, 6
      %s762 = scalar_select %p761, %s32, 6
      %s763 = smul.addr %s762, 8
      %s764 = scalar_lea.vmem %s13, %s763
      // Predicated region
      $region73: #{seq2seq_forward.3} parent=67 // pred_check
        %p765 = pneg %p307
      $region74: #{seq2seq_forward.3} parent=67 // pred_check_branch
        %767 = sbr.rel (%p765) target = $region76
      $region75: #{seq2seq_forward.3} parent=67 // pred_region
        _
      $region76: #{seq2seq_forward.3} parent=67 // pred_fallthru
        _
    $region68: #{seq2seq_forward.3} parent=5 // pred_fallthru
      _
    %p768 = scmp.le.s32.totalorder 2, %s27
    // Predicated region
    $region77: #{seq2seq_forward.3} parent=5 // pred_check
      %p769 = pneg %p768
    $region78: #{seq2seq_forward.3} parent=5 // pred_check_branch
      %771 = sbr.rel (%p769) target = $region80
    $region79: #{seq2seq_forward.3} parent=5 // pred_region
      %s772 = ssub.s32 %s27, 2
      // Predicated region
      $region81: #{seq2seq_forward.3} parent=79 // pred_check
        %p773 = pneg %p313
      $region82: #{seq2seq_forward.3} parent=79 // pred_check_branch
        %775 = sbr.rel (%p773) target = $region84
      $region83: #{seq2seq_forward.3} parent=79 // pred_region
        %p776 = scmp.lt.s32.totalorder %s33, 6
        %s777 = scalar_select %p776, %s33, 6
        %s778 = smul.addr %s777, 8
        %s779 = scalar_lea.vmem %s13, %s778
      $region84: #{seq2seq_forward.3} parent=79 // pred_fallthru
        _
    $region80: #{seq2seq_forward.3} parent=5 // pred_fallthru
      _
  $region6: #{seq2seq_forward.3} parent=0 // loop_footer
    %s31 = sadd.s32 1, %s27
  $region7: #{seq2seq_forward.3} parent=0 // loop_footer_branch
    %26 = sbr.rel target = $region3
  $region8: #{seq2seq_forward.3} parent=0 // loop_exit
    _

</llo_original>
